<compile_context>
chip_gen: v6e
topology: v6e:2x2x1
jax: 0.10.0
libtpu: 0.0.40
codegen_flags: <defaults>
</compile_context>

<pallas_src>
import jax
import jax.numpy as jnp
from jax import lax
from jax.experimental import pallas as pl
from jax.experimental.pallas import tpu as pltpu


def _round_up(x, m):
    return -(-x // m) * m


# ----------------------------------------------------------------------------
# Host-side lowering of a conv weight (KH, KW, Cin, Cout) into KH block-
# Toeplitz matrices of shape (W_in*Cin, OW*Cout), so that
#   out[oh, ow*Cout+co] = sum_kh  act[oh+kh, :] @ BigW[kh]
# computes the valid 2-D cross-correlation in the (rows, W*C) channel-minor
# activation layout.  (Row layout wi*Cin+ci, column layout ow*Cout+co.)
# ----------------------------------------------------------------------------
def lower_conv_weight(w, width_in):
    KH, KW, Cin, Cout = w.shape
    OW = width_in - KW + 1
    wi = jnp.arange(width_in)[:, None, None]
    ow = jnp.arange(OW)[None, :, None]
    kw = jnp.arange(KW)[None, None, :]
    mask = (wi == ow + kw).astype(w.dtype)              # (W_in, OW, KW)
    big = jnp.einsum("wok,hkcd->hwcod", mask, w)        # (KH, W_in, Cin, OW, Cout)
    return big.reshape(KH, width_in * Cin, OW * Cout)


# ----------------------------------------------------------------------------
# One-time host preprocessing: build the packed, lane-padded, bf16 operands.
# Done OUTSIDE the per-call jit so the Toeplitz expansion is not re-traced.
# ----------------------------------------------------------------------------
def prepare_params(params, input_channel, input_dim, tile_batch):
    convs = params["convs"]
    L = len(convs)
    KH = convs[0][0].shape[0]
    H = W = input_dim

    # Common lane width D (multiple of 128) covering input and every layer out.
    widths = [W * input_channel]
    cur_W = W
    for (w, _) in convs:
        KW, Cout = w.shape[1], w.shape[3]
        cur_W = cur_W - KW + 1
        widths.append(cur_W * Cout)
    D = _round_up(max(widths), 128)

    # Stacked Toeplitz weights (L, KH, D, D) and biases (L+1, D).
    # Padded weight columns / bias lanes are exactly 0, so padded activation
    # lanes stay exactly 0 through ReLU in every layer.
    w_stack = jnp.zeros((L, KH, D, D), jnp.float32)
    b_stack = jnp.zeros((L + 1, D), jnp.float32)
    cur_W, cin = W, input_channel
    for l, (w, b) in enumerate(convs):
        KW, Cout = w.shape[1], w.shape[3]
        OW = cur_W - KW + 1
        bw = lower_conv_weight(w, cur_W)               # (KH, cur_W*cin, OW*Cout)
        w_stack = w_stack.at[l, :, :cur_W * cin, :OW * Cout].set(bw)
        # Bias tiled channel-minor (lane = ow*Cout + c), matching the Toeplitz
        # output column layout; padded lanes stay zero.
        b_stack = b_stack.at[l, :OW * Cout].set(jnp.tile(b.reshape(-1), OW))
        cur_W, cin = OW, Cout
    OH_L = OW_L = cur_W                                # square feature map
    C = cin

    # GAP + FC folded into one (D, OUT) matrix: fc.weight tiled over the OW_L
    # REAL width positions (channel-minor, same lane order as the activations),
    # scaled by 1/(OH_L*OW_L); rows for padded lanes stay 0 so garbage lanes
    # can never reach the output.
    OUT = params["fc_w"].shape[1]
    fcw = jnp.zeros((D, OUT), jnp.float32)
    fcw = fcw.at[:OW_L * C, :].set(
        jnp.tile(params["fc_w"], (OW_L, 1)) / float(OH_L * OW_L))
    b_stack = b_stack.at[L, :OUT].set(params["fc_b"].reshape(-1))

    # Pooling-selection matrix S (TB, R_L): S[t, t*P + r] = 1 for r < OH_L,
    # else 0 (masks the garbage rows between images and the bottom pad rows).
    TB = tile_batch
    P = _round_up(H, 8)                       # per-image row pitch (8-aligned)
    pad_rows = _round_up(L * (KH - 1), 8)     # extra rows for the kh shifts
    R0 = TB * P + pad_rows
    R_L = R0 - L * (KH - 1)
    rows = jnp.arange(R_L)
    sel = ((rows[None, :] // P == jnp.arange(TB)[:, None])
           & (rows[None, :] % P < OH_L)
           & (rows[None, :] < TB * P))
    S = sel.astype(jnp.float32)

    return {
        "w": w_stack.astype(jnp.bfloat16),    # bf16 MXU operands (host-cast)
        "b": b_stack,                         # f32 (added to f32 accumulator)
        "fcw": fcw.astype(jnp.bfloat16),
        "S": S.astype(jnp.bfloat16),          # exact 0/1 values
    }


# ----------------------------------------------------------------------------
# Fully fused kernel: TB images per grid step, all layers + GAP + FC.
#   x_ref   : (1, R0, D)      TB images stacked on sublanes with pitch P
#   w_ref   : (L, KH, D, D)   stacked, lane-padded block-Toeplitz weights, bf16
#   b_ref   : (L+1, D)        conv biases (rows 0..L-1) + fc bias (row L), f32
#   fcw_ref : (D, OUT)        GAP+FC folded matrix, bf16
#   s_ref   : (TB, R_L)       pooling-selection matrix, bf16
#   o_ref   : (TB, OUT)
# Activations never touch HBM or VMEM scratch: they stay as values.
# ----------------------------------------------------------------------------
def fused_cnn_kernel(x_ref, w_ref, b_ref, fcw_ref, s_ref, o_ref):
    L, KH = w_ref.shape[0], w_ref.shape[1]
    OUT = fcw_ref.shape[1]

    act = x_ref[0]                           # (R0, D) f32 value
    R = act.shape[0]
    for l in range(L):
        Rn = R - (KH - 1)
        acc = None
        for kh in range(KH):
            # Shifted slab: rows [kh, kh+Rn).  The 8-aligned per-image pitch
            # guarantees every valid output row reads only valid input rows.
            slab = act[kh:kh + Rn, :].astype(jnp.bfloat16)
            d = jnp.dot(slab, w_ref[l, kh],
                        preferred_element_type=jnp.float32)
            # Bare acc+dot chain -> v7x MRB in-place accumulation.
            acc = d if acc is None else acc + d
        # Slab-wide bias + ReLU (bias pre-tiled to lane layout, pad lanes = 0).
        act = jnp.maximum(acc + b_ref[l:l + 1, :], 0.0)      # (Rn, D) f32
        R = Rn

    # GAP: per-image masked row-sum via one small matmul (scale folded in fcw).
    pooled = jnp.dot(s_ref[...], act.astype(jnp.bfloat16),
                     preferred_element_type=jnp.float32)     # (TB, D)
    out = jnp.dot(pooled.astype(jnp.bfloat16), fcw_ref[...],
                  preferred_element_type=jnp.float32)        # (TB, OUT)
    o_ref[...] = out + b_ref[L:L + 1, 0:OUT]


# ----------------------------------------------------------------------------
# Forward pass — x is NCHW exactly like the torch module.
# All static sizes are derived from operand shapes, so this jits cleanly.
# ----------------------------------------------------------------------------
@jax.jit
def cnn_forward(x_nchw, packed):
    w, b, fcw, S = packed["w"], packed["b"], packed["fcw"], packed["S"]
    L, KH, D, _ = w.shape
    OUT = fcw.shape[1]
    TB, R_L = S.shape
    R0 = R_L + L * (KH - 1)

    B, Cin, H, W = x_nchw.shape
    P = _round_up(H, 8)
    pad_rows = R0 - TB * P
    assert pad_rows >= L * (KH - 1), "packed params do not match input shape"
    G = -(-B // TB)
    B_pad = G * TB

    # NCHW -> (B, H, W*Cin) channel-minor; pad batch / rows / lanes; pack TB
    # images per grid step with per-image row pitch P (zero bottom pad rows).
    # TODO(synk): accept NHWC input directly to avoid this transpose round trip.
    x = jnp.transpose(x_nchw, (0, 2, 3, 1)).reshape(B, H, W * Cin)
    x = jnp.pad(x, ((0, B_pad - B), (0, P - H), (0, D - W * Cin)))
    x = x.reshape(G, TB * P, D)
    x = jnp.pad(x, ((0, 0), (0, pad_rows), (0, 0)))          # (G, R0, D)

    return pl.pallas_call(
        fused_cnn_kernel,
        out_shape=jax.ShapeDtypeStruct((B_pad, OUT), jnp.float32),
        grid=(G,),
        in_specs=[
            pl.BlockSpec((1, R0, D), lambda g: (g, 0, 0)),
            # Grid-invariant operands (constant index_map -> not re-copied per
            # step).  At larger channel/input_dim, also add
            # pipeline_mode=pl.Buffered(1) here and size vmem_limit_bytes
            # against v7x's 64 MiB VMEM; at these shapes (<1 MiB) it's moot.
            pl.BlockSpec((L, KH, D, D), lambda g: (0, 0, 0, 0)),
            pl.BlockSpec((L + 1, D), lambda g: (0, 0)),
            pl.BlockSpec((D, OUT), lambda g: (0, 0)),
            pl.BlockSpec((TB, R_L), lambda g: (0, 0)),
        ],
        out_specs=pl.BlockSpec((TB, OUT), lambda g: (g, 0)),
        compiler_params=pltpu.CompilerParams(
            dimension_semantics=("parallel",)),
    )(x, w, b, fcw, S)[:B]


# ----------------------------------------------------------------------------
# Parameter construction (deterministic, matches the shapes in CNN.__init__).
# Conv weights stored as (KH, KW, Cin, Cout); fc weight stored transposed.
# ----------------------------------------------------------------------------
def init_params(key, input_channel, filtersize, num_cv_layers, channels,
                outputsize):
    params = {"convs": []}
    cin = input_channel
    for _ in range(num_cv_layers):
        key, kw_, kb_ = jax.random.split(key, 3)
        fan_in = cin * filtersize * filtersize
        bound = 1.0 / jnp.sqrt(fan_in)
        w = jax.random.uniform(kw_, (filtersize, filtersize, cin, channels),
                               jnp.float32, -bound, bound)
        b = jax.random.uniform(kb_, (1, channels), jnp.float32, -bound, bound)
        params["convs"].append((w, b))
        cin = channels
    key, kw_, kb_ = jax.random.split(key, 3)
    # torch.nn.init.normal_(fc.weight, std=1/sqrt(channels)); stored transposed.
    params["fc_w"] = (jax.random.normal(kw_, (channels, outputsize),
                                        jnp.float32)
                      / jnp.sqrt(float(channels)))
    fc_bound = 1.0 / jnp.sqrt(float(channels))
    params["fc_b"] = jax.random.uniform(kb_, (1, outputsize), jnp.float32,
                                        -fc_bound, fc_bound)
    return params


# Plain-JAX reference (f32 end to end) for correctness checking.
def cnn_reference(x_nchw, params):
    x = x_nchw
    for (w, b) in params["convs"]:
        w_oihw = jnp.transpose(w, (3, 2, 0, 1))   # (KH,KW,Cin,Cout)->(O,I,KH,KW)
        x = lax.conv_general_dilated(x, w_oihw, (1, 1), "VALID")
        x = jnp.maximum(x + b.reshape(1, -1, 1, 1), 0.0)
    pooled = jnp.mean(x, axis=(2, 3))            # (B, channels)
    return pooled @ params["fc_w"] + params["fc_b"]


if __name__ == "__main__":
    # Small config consistent with the module's constructor:
    input_channel, input_dim = 4, 16
    filtersize, num_cv_layers = 3, 2
    channels, outputsize = 8, 10
    # feature_size = input_dim - num_cv_layers*(filtersize-1) = 12
    batch, tile_batch = 16, 8   # grid = 2 (>=2 keeps both v7x TCs busy); M~136

    key = jax.random.PRNGKey(0)
    key, kx = jax.random.split(key)
    x = jax.random.normal(kx, (batch, input_channel, input_dim, input_dim),
                          jnp.float32)           # NCHW, like torch
    params = init_params(key, input_channel, filtersize, num_cv_layers,
                         channels, outputsize)
    packed = prepare_params(params, input_channel, input_dim, tile_batch)

    out = cnn_forward(x, packed)
    out = jax.block_until_ready(out)

    ref = cnn_reference(x, params)
    assert out.shape == (batch, outputsize)
    # bf16 MXU operands with f32 accumulation -> slightly relaxed tolerance.
    assert jnp.allclose(out, ref, atol=2e-2, rtol=2e-2), (
        "mismatch vs reference")

    print("KERNEL_OK")
</pallas_src>

<mosaic_0001>
module attributes {stable_mosaic.version = 11 : i64} {
  func.func @fused_cnn_kernel(%arg0: i32, %arg1: memref<1x136x128xf32, #tpu.memory_space<vmem>>, %arg2: memref<2x3x128x128xbf16, #tpu.memory_space<vmem>>, %arg3: memref<3x128xf32, #tpu.memory_space<vmem>>, %arg4: memref<128x10xbf16, #tpu.memory_space<vmem>>, %arg5: memref<8x132xbf16, #tpu.memory_space<vmem>>, %arg6: memref<8x10xf32, #tpu.memory_space<vmem>>) attributes {dimension_semantics = [#tpu.dimension_semantics<parallel>], iteration_bounds = array<i64: 2>, scalar_prefetch = 0 : i64, scratch_operands = 0 : i64, tpu.core_type = #tpu.core_type<tc>, window_params = [{transform_indices = @transform_0, window_bounds = array<i64: 1, 136, 128>}, {pipeline_mode = #tpu.pipeline_mode<synchronous>, transform_indices = @transform_1, window_bounds = array<i64: 2, 3, 128, 128>}, {pipeline_mode = #tpu.pipeline_mode<synchronous>, transform_indices = @transform_2, window_bounds = array<i64: 3, 128>}, {pipeline_mode = #tpu.pipeline_mode<synchronous>, transform_indices = @transform_3, window_bounds = array<i64: 128, 10>}, {pipeline_mode = #tpu.pipeline_mode<synchronous>, transform_indices = @transform_4, window_bounds = array<i64: 8, 132>}, {transform_indices = @transform_5, window_bounds = array<i64: 8, 10>}]} {
    %c0 = arith.constant 0 : index
    %c0_0 = arith.constant 0 : index
    %c0_1 = arith.constant 0 : index
    %0 = vector.load %arg1[%c0, %c0_0, %c0_1] : memref<1x136x128xf32, #tpu.memory_space<vmem>>, vector<1x136x128xf32>
    %1 = vector.shape_cast %0 : vector<1x136x128xf32> to vector<136x128xf32>
    %2 = vector.extract_strided_slice %1 {offsets = [0, 0], sizes = [134, 128], strides = [1, 1]} : vector<136x128xf32> to vector<134x128xf32>
    %3 = arith.truncf %2 : vector<134x128xf32> to vector<134x128xbf16>
    %c0_2 = arith.constant 0 : index
    %c0_3 = arith.constant 0 : index
    %c0_4 = arith.constant 0 : index
    %c0_5 = arith.constant 0 : index
    %4 = vector.load %arg2[%c0_2, %c0_3, %c0_4, %c0_5] : memref<2x3x128x128xbf16, #tpu.memory_space<vmem>>, vector<1x1x128x128xbf16>
    %5 = vector.shape_cast %4 : vector<1x1x128x128xbf16> to vector<128x128xbf16>
    %cst = arith.constant dense<0.000000e+00> : vector<134x128xf32>
    %6 = tpu.matmul %3, %5, %cst {dimension_numbers = #tpu.dot_dimension_numbers<[1], [0], [0], [1], [0, 0, 1, 1], [], []>} : vector<134x128xbf16>, vector<128x128xbf16>, vector<134x128xf32> -> vector<134x128xf32>
    %7 = vector.extract_strided_slice %1 {offsets = [1, 0], sizes = [134, 128], strides = [1, 1]} : vector<136x128xf32> to vector<134x128xf32>
    %8 = arith.truncf %7 : vector<134x128xf32> to vector<134x128xbf16>
    %c0_6 = arith.constant 0 : index
    %c1 = arith.constant 1 : index
    %c0_7 = arith.constant 0 : index
    %c0_8 = arith.constant 0 : index
    %9 = vector.load %arg2[%c0_6, %c1, %c0_7, %c0_8] : memref<2x3x128x128xbf16, #tpu.memory_space<vmem>>, vector<1x1x128x128xbf16>
    %10 = vector.shape_cast %9 : vector<1x1x128x128xbf16> to vector<128x128xbf16>
    %cst_9 = arith.constant dense<0.000000e+00> : vector<134x128xf32>
    %11 = tpu.matmul %8, %10, %cst_9 {dimension_numbers = #tpu.dot_dimension_numbers<[1], [0], [0], [1], [0, 0, 1, 1], [], []>} : vector<134x128xbf16>, vector<128x128xbf16>, vector<134x128xf32> -> vector<134x128xf32>
    %12 = arith.addf %6, %11 : vector<134x128xf32>
    %13 = vector.extract_strided_slice %1 {offsets = [2, 0], sizes = [134, 128], strides = [1, 1]} : vector<136x128xf32> to vector<134x128xf32>
    %14 = arith.truncf %13 : vector<134x128xf32> to vector<134x128xbf16>
    %c0_10 = arith.constant 0 : index
    %c2 = arith.constant 2 : index
    %c0_11 = arith.constant 0 : index
    %c0_12 = arith.constant 0 : index
    %15 = vector.load %arg2[%c0_10, %c2, %c0_11, %c0_12] : memref<2x3x128x128xbf16, #tpu.memory_space<vmem>>, vector<1x1x128x128xbf16>
    %16 = vector.shape_cast %15 : vector<1x1x128x128xbf16> to vector<128x128xbf16>
    %cst_13 = arith.constant dense<0.000000e+00> : vector<134x128xf32>
    %17 = tpu.matmul %14, %16, %cst_13 {dimension_numbers = #tpu.dot_dimension_numbers<[1], [0], [0], [1], [0, 0, 1, 1], [], []>} : vector<134x128xbf16>, vector<128x128xbf16>, vector<134x128xf32> -> vector<134x128xf32>
    %18 = arith.addf %12, %17 : vector<134x128xf32>
    %c0_14 = arith.constant 0 : index
    %c0_15 = arith.constant 0 : index
    %19 = vector.load %arg3[%c0_14, %c0_15] : memref<3x128xf32, #tpu.memory_space<vmem>>, vector<1x128xf32>
    %20 = vector.broadcast %19 : vector<1x128xf32> to vector<134x128xf32>
    %21 = arith.addf %18, %20 : vector<134x128xf32>
    %cst_16 = arith.constant 0.000000e+00 : f32
    %22 = vector.broadcast %cst_16 : f32 to vector<134x128xf32>
    %23 = arith.maximumf %21, %22 : vector<134x128xf32>
    %24 = vector.extract_strided_slice %23 {offsets = [0, 0], sizes = [132, 128], strides = [1, 1]} : vector<134x128xf32> to vector<132x128xf32>
    %25 = arith.truncf %24 : vector<132x128xf32> to vector<132x128xbf16>
    %c1_17 = arith.constant 1 : index
    %c0_18 = arith.constant 0 : index
    %c0_19 = arith.constant 0 : index
    %c0_20 = arith.constant 0 : index
    %26 = vector.load %arg2[%c1_17, %c0_18, %c0_19, %c0_20] : memref<2x3x128x128xbf16, #tpu.memory_space<vmem>>, vector<1x1x128x128xbf16>
    %27 = vector.shape_cast %26 : vector<1x1x128x128xbf16> to vector<128x128xbf16>
    %cst_21 = arith.constant dense<0.000000e+00> : vector<132x128xf32>
    %28 = tpu.matmul %25, %27, %cst_21 {dimension_numbers = #tpu.dot_dimension_numbers<[1], [0], [0], [1], [0, 0, 1, 1], [], []>} : vector<132x128xbf16>, vector<128x128xbf16>, vector<132x128xf32> -> vector<132x128xf32>
    %29 = vector.extract_strided_slice %23 {offsets = [1, 0], sizes = [132, 128], strides = [1, 1]} : vector<134x128xf32> to vector<132x128xf32>
    %30 = arith.truncf %29 : vector<132x128xf32> to vector<132x128xbf16>
    %c1_22 = arith.constant 1 : index
    %c1_23 = arith.constant 1 : index
    %c0_24 = arith.constant 0 : index
    %c0_25 = arith.constant 0 : index
    %31 = vector.load %arg2[%c1_22, %c1_23, %c0_24, %c0_25] : memref<2x3x128x128xbf16, #tpu.memory_space<vmem>>, vector<1x1x128x128xbf16>
    %32 = vector.shape_cast %31 : vector<1x1x128x128xbf16> to vector<128x128xbf16>
    %cst_26 = arith.constant dense<0.000000e+00> : vector<132x128xf32>
    %33 = tpu.matmul %30, %32, %cst_26 {dimension_numbers = #tpu.dot_dimension_numbers<[1], [0], [0], [1], [0, 0, 1, 1], [], []>} : vector<132x128xbf16>, vector<128x128xbf16>, vector<132x128xf32> -> vector<132x128xf32>
    %34 = arith.addf %28, %33 : vector<132x128xf32>
    %35 = vector.extract_strided_slice %23 {offsets = [2, 0], sizes = [132, 128], strides = [1, 1]} : vector<134x128xf32> to vector<132x128xf32>
    %36 = arith.truncf %35 : vector<132x128xf32> to vector<132x128xbf16>
    %c1_27 = arith.constant 1 : index
    %c2_28 = arith.constant 2 : index
    %c0_29 = arith.constant 0 : index
    %c0_30 = arith.constant 0 : index
    %37 = vector.load %arg2[%c1_27, %c2_28, %c0_29, %c0_30] : memref<2x3x128x128xbf16, #tpu.memory_space<vmem>>, vector<1x1x128x128xbf16>
    %38 = vector.shape_cast %37 : vector<1x1x128x128xbf16> to vector<128x128xbf16>
    %cst_31 = arith.constant dense<0.000000e+00> : vector<132x128xf32>
    %39 = tpu.matmul %36, %38, %cst_31 {dimension_numbers = #tpu.dot_dimension_numbers<[1], [0], [0], [1], [0, 0, 1, 1], [], []>} : vector<132x128xbf16>, vector<128x128xbf16>, vector<132x128xf32> -> vector<132x128xf32>
    %40 = arith.addf %34, %39 : vector<132x128xf32>
    %c1_32 = arith.constant 1 : index
    %c0_33 = arith.constant 0 : index
    %41 = vector.load %arg3[%c1_32, %c0_33] : memref<3x128xf32, #tpu.memory_space<vmem>>, vector<1x128xf32>
    %42 = vector.broadcast %41 : vector<1x128xf32> to vector<132x128xf32>
    %43 = arith.addf %40, %42 : vector<132x128xf32>
    %cst_34 = arith.constant 0.000000e+00 : f32
    %44 = vector.broadcast %cst_34 : f32 to vector<132x128xf32>
    %45 = arith.maximumf %43, %44 : vector<132x128xf32>
    %c0_35 = arith.constant 0 : index
    %c0_36 = arith.constant 0 : index
    %46 = vector.load %arg5[%c0_35, %c0_36] : memref<8x132xbf16, #tpu.memory_space<vmem>>, vector<8x132xbf16>
    %47 = arith.truncf %45 : vector<132x128xf32> to vector<132x128xbf16>
    %cst_37 = arith.constant dense<0.000000e+00> : vector<8x128xf32>
    %48 = tpu.matmul %46, %47, %cst_37 {dimension_numbers = #tpu.dot_dimension_numbers<[1], [0], [0], [1], [0, 0, 1, 1], [], []>} : vector<8x132xbf16>, vector<132x128xbf16>, vector<8x128xf32> -> vector<8x128xf32>
    %49 = arith.truncf %48 : vector<8x128xf32> to vector<8x128xbf16>
    %c0_38 = arith.constant 0 : index
    %c0_39 = arith.constant 0 : index
    %50 = vector.load %arg4[%c0_38, %c0_39] : memref<128x10xbf16, #tpu.memory_space<vmem>>, vector<128x10xbf16>
    %cst_40 = arith.constant dense<0.000000e+00> : vector<8x10xf32>
    %51 = tpu.matmul %49, %50, %cst_40 {dimension_numbers = #tpu.dot_dimension_numbers<[1], [0], [0], [1], [0, 0, 1, 1], [], []>} : vector<8x128xbf16>, vector<128x10xbf16>, vector<8x10xf32> -> vector<8x10xf32>
    %c2_41 = arith.constant 2 : index
    %c0_42 = arith.constant 0 : index
    %52 = vector.load %arg3[%c2_41, %c0_42] : memref<3x128xf32, #tpu.memory_space<vmem>>, vector<1x10xf32>
    %53 = vector.broadcast %52 : vector<1x10xf32> to vector<8x10xf32>
    %54 = arith.addf %51, %53 : vector<8x10xf32>
    %c0_43 = arith.constant 0 : index
    %c0_44 = arith.constant 0 : index
    %55 = vector.load %arg6[%c0_43, %c0_44] : memref<8x10xf32, #tpu.memory_space<vmem>>, vector<8x10xf32>
    tpu.vector_store %arg6[%c0_43, %c0_44], %54 {strides = array<i32>} : memref<8x10xf32, #tpu.memory_space<vmem>>, vector<8x10xf32>,
    return
  }
  func.func @transform_0(%arg0: i32) -> (i32, i32, i32) {
    %c0_i32 = arith.constant 0 : i32
    %c0_i32_0 = arith.constant 0 : i32
    %c0_i32_1 = arith.constant 0 : i32
    return %arg0, %c0_i32, %c0_i32_0 : i32, i32, i32
  }
  func.func @transform_1(%arg0: i32) -> (i32, i32, i32, i32) {
    %c0_i32 = arith.constant 0 : i32
    %c0_i32_0 = arith.constant 0 : i32
    %c0_i32_1 = arith.constant 0 : i32
    %c0_i32_2 = arith.constant 0 : i32
    %c0_i32_3 = arith.constant 0 : i32
    return %c0_i32, %c0_i32_0, %c0_i32_1, %c0_i32_2 : i32, i32, i32, i32
  }
  func.func @transform_2(%arg0: i32) -> (i32, i32) {
    %c0_i32 = arith.constant 0 : i32
    %c0_i32_0 = arith.constant 0 : i32
    %c0_i32_1 = arith.constant 0 : i32
    return %c0_i32, %c0_i32_0 : i32, i32
  }
  func.func @transform_3(%arg0: i32) -> (i32, i32) {
    %c0_i32 = arith.constant 0 : i32
    %c0_i32_0 = arith.constant 0 : i32
    %c0_i32_1 = arith.constant 0 : i32
    return %c0_i32, %c0_i32_0 : i32, i32
  }
  func.func @transform_4(%arg0: i32) -> (i32, i32) {
    %c0_i32 = arith.constant 0 : i32
    %c0_i32_0 = arith.constant 0 : i32
    %c0_i32_1 = arith.constant 0 : i32
    return %c0_i32, %c0_i32_0 : i32, i32
  }
  func.func @transform_5(%arg0: i32) -> (i32, i32) {
    %c0_i32 = arith.constant 0 : i32
    %c0_i32_0 = arith.constant 0 : i32
    return %arg0, %c0_i32 : i32, i32
  }
}

</mosaic_0001>

<llo_original>
// kernel: cnn_forward.1
$region0: #{cnn_forward.1}
  #allocation0 [shape = 'u32[]', space=smem, size = 0x4, offset = 0x4, fixed_abs, tag = 'smem constant byte address 0x4 - core index']
  #allocation1 [shape = 'u32[144,128]{1,0:T(1,128)}', space=vmem, size = 0x12000, scoped, tag = 'internal scratch']
  %s0 = inlined_call_operand.vmem [shape: f32[2,136,128], index: 0, kind: input, shape index: {}]
  %s1 = inlined_call_operand.vmem [shape: bf16[2,3,128,128], index: 1, kind: input, shape index: {}]
  %s2 = inlined_call_operand.vmem [shape: f32[3,128], index: 2, kind: input, shape index: {}]
  %s3 = inlined_call_operand.vmem [shape: bf16[128,10], index: 3, kind: input, shape index: {}]
  %s4 = inlined_call_operand.vmem [shape: bf16[8,132], index: 4, kind: input, shape index: {}]
  %s5 = inlined_call_operand.hbm [shape: f32[16,10], index: 5, kind: output, shape index: {}]
  %s6 = sld [smem:[#allocation0]]
  $region53: #{cnn_forward.1} parent=0
    _
  %s8 = ssub.s32 1, %s6
  %s9 = scalar_select 0, %s8, %s6
  $region1: #{cnn_forward.1} parent=0
    #allocation2 [shape = 'u8[8192]{0}', space=vmem, size = 0x2000, scoped, tag = 'output window, operand 0']
    #allocation3 [shape = 's32[2]{0}', space=sflag, size = 0x8, scoped, tag = 'scoped memory for cnn_forward.1']
    %10 = vsyncpa [#allocation3], 0
    %s11 = scalar_lea.sflag [#allocation3], 1
    %12 = vsyncpa %s11, 0
    loop: start=0, step=1, limit=4
    $region2: #{cnn_forward.1} parent=1 // loop_pre_header
      _
    $region3: #{cnn_forward.1} parent=1 // loop_header
      %s14 = sphi 0, %s18
      %p15 = scmp.ge.s32.totalorder %s14, 4
      %s24 = sphi 0, %s26
      %s27 = sphi 0, %s24
      %s28 = sphi 0, %s27
      %s44 = sphi 0, %s28
      %s48 = sphi 0, %s48
      %s50 = sphi 0, %s48
      %s51 = sphi 0, %s50
      %s65 = sphi 0, %s51
      %s69 = sphi 0, %s69
      %s71 = sphi 0, %s69
      %s72 = sphi 0, %s71
      %s86 = sphi 0, %s72
      %s90 = sphi 0, %s90
      %s92 = sphi 0, %s90
      %s93 = sphi 0, %s92
      %s107 = sphi 0, %s93
      %s111 = sphi 0, %s111
      %s113 = sphi 0, %s111
      %s114 = sphi 0, %s113
      %s128 = sphi 0, %s114
      %s134 = sphi 0, %s136
      %s137 = sphi 0, %s134
      %s138 = sphi 0, %s137
      %s154 = sphi 0, %s138
    $region4: #{cnn_forward.1} parent=1 // loop_header_branch
      %17 = sbr.rel (%p15) target = $region8
    $region5: #{cnn_forward.1} parent=1 // loop_body
      %s19 = ssub.s32 %s14, 1
      %s20 = ssub.s32 %s14, 2
      %s21 = sadd.s32 %s14, 1
      %s22 = ssub.s32 %s14, %s21
      %p23 = scmp.eq.s32.totalorder %s22, 0
      %s25 = sadd.s32 %s24, 1
      %s26 = scalar_select %p23, %s24, %s25
      %p29 = pneg %p23
      %p30 = scmp.eq.s32.totalorder %s14, 1
      %p31 = por %p29, %p30
      %p32 = scmp.ne.s32.totalorder %s24, %s27
      %p33 = scmp.eq.s32.totalorder %s14, 0
      %p34 = por %p32, %p33
      %p35 = scmp.ne.s32.totalorder %s24, %s27
      %p36 = scmp.eq.s32.totalorder %s19, 1
      %p37 = por %p35, %p36
      %p38 = scmp.ne.s32.totalorder %s27, %s28
      %p39 = scmp.eq.s32.totalorder %s19, 0
      %p40 = por %p38, %p39
      %p41 = scmp.ne.s32.totalorder %s27, %s28
      %p42 = scmp.eq.s32.totalorder %s20, 1
      %p43 = por %p41, %p42
      %p45 = scmp.ne.s32.totalorder %s28, %s44
      %p46 = scmp.eq.s32.totalorder %s20, 0
      %p47 = por %p45, %p46
      %s49 = sadd.s32 %s48, 1
      %p52 = scmp.eq.s32.totalorder %s14, 1
      %p53 = scmp.ne.s32.totalorder %s48, %s50
      %p54 = scmp.eq.s32.totalorder %s14, 0
      %p55 = por %p53, %p54
      %p56 = scmp.ne.s32.totalorder %s48, %s50
      %p57 = scmp.eq.s32.totalorder %s19, 1
      %p58 = por %p56, %p57
      %p59 = scmp.ne.s32.totalorder %s50, %s51
      %p60 = scmp.eq.s32.totalorder %s19, 0
      %p61 = por %p59, %p60
      %p62 = scmp.ne.s32.totalorder %s50, %s51
      %p63 = scmp.eq.s32.totalorder %s20, 1
      %p64 = por %p62, %p63
      %p66 = scmp.ne.s32.totalorder %s51, %s65
      %p67 = scmp.eq.s32.totalorder %s20, 0
      %p68 = por %p66, %p67
      %s70 = sadd.s32 %s69, 1
      %p73 = scmp.eq.s32.totalorder %s14, 1
      %p74 = scmp.ne.s32.totalorder %s69, %s71
      %p75 = scmp.eq.s32.totalorder %s14, 0
      %p76 = por %p74, %p75
      %p77 = scmp.ne.s32.totalorder %s69, %s71
      %p78 = scmp.eq.s32.totalorder %s19, 1
      %p79 = por %p77, %p78
      %p80 = scmp.ne.s32.totalorder %s71, %s72
      %p81 = scmp.eq.s32.totalorder %s19, 0
      %p82 = por %p80, %p81
      %p83 = scmp.ne.s32.totalorder %s71, %s72
      %p84 = scmp.eq.s32.totalorder %s20, 1
      %p85 = por %p83, %p84
      %p87 = scmp.ne.s32.totalorder %s72, %s86
      %p88 = scmp.eq.s32.totalorder %s20, 0
      %p89 = por %p87, %p88
      %s91 = sadd.s32 %s90, 1
      %p94 = scmp.eq.s32.totalorder %s14, 1
      %p95 = scmp.ne.s32.totalorder %s90, %s92
      %p96 = scmp.eq.s32.totalorder %s14, 0
      %p97 = por %p95, %p96
      %p98 = scmp.ne.s32.totalorder %s90, %s92
      %p99 = scmp.eq.s32.totalorder %s19, 1
      %p100 = por %p98, %p99
      %p101 = scmp.ne.s32.totalorder %s92, %s93
      %p102 = scmp.eq.s32.totalorder %s19, 0
      %p103 = por %p101, %p102
      %p104 = scmp.ne.s32.totalorder %s92, %s93
      %p105 = scmp.eq.s32.totalorder %s20, 1
      %p106 = por %p104, %p105
      %p108 = scmp.ne.s32.totalorder %s93, %s107
      %p109 = scmp.eq.s32.totalorder %s20, 0
      %p110 = por %p108, %p109
      %s112 = sadd.s32 %s111, 1
      %p115 = scmp.eq.s32.totalorder %s14, 1
      %p116 = scmp.ne.s32.totalorder %s111, %s113
      %p117 = scmp.eq.s32.totalorder %s14, 0
      %p118 = por %p116, %p117
      %p119 = scmp.ne.s32.totalorder %s111, %s113
      %p120 = scmp.eq.s32.totalorder %s19, 1
      %p121 = por %p119, %p120
      %p122 = scmp.ne.s32.totalorder %s113, %s114
      %p123 = scmp.eq.s32.totalorder %s19, 0
      %p124 = por %p122, %p123
      %p125 = scmp.ne.s32.totalorder %s113, %s114
      %p126 = scmp.eq.s32.totalorder %s20, 1
      %p127 = por %p125, %p126
      %p129 = scmp.ne.s32.totalorder %s114, %s128
      %p130 = scmp.eq.s32.totalorder %s20, 0
      %p131 = por %p129, %p130
      %s132 = ssub.s32 %s14, %s21
      %p133 = scmp.eq.s32.totalorder %s132, 0
      %s135 = sadd.s32 %s134, 1
      %s136 = scalar_select %p133, %s134, %s135
      %p139 = pneg %p133
      %p140 = scmp.eq.s32.totalorder %s14, 1
      %p141 = por %p139, %p140
      %p142 = scmp.ne.s32.totalorder %s134, %s137
      %p143 = scmp.eq.s32.totalorder %s14, 0
      %p144 = por %p142, %p143
      %p145 = scmp.ne.s32.totalorder %s134, %s137
      %p146 = scmp.eq.s32.totalorder %s19, 1
      %p147 = por %p145, %p146
      %p148 = scmp.ne.s32.totalorder %s137, %s138
      %p149 = scmp.eq.s32.totalorder %s19, 0
      %p150 = por %p148, %p149
      %p151 = scmp.ne.s32.totalorder %s137, %s138
      %p152 = scmp.eq.s32.totalorder %s20, 1
      %p153 = por %p151, %p152
      %p155 = scmp.ne.s32.totalorder %s138, %s154
      %p156 = scmp.eq.s32.totalorder %s20, 0
      %p157 = por %p155, %p156
      %p158 = scmp.le.s32.totalorder 1, %s14
      %p159 = scmp.lt.s32.totalorder %s14, 3
      %p160 = pnand %p158, %p159
      %p161 = pneg %p160
      // Predicated region
      $region9: #{cnn_forward.1} parent=5 // pred_check
        _
      $region10: #{cnn_forward.1} parent=5 // pred_check_branch
        %163 = sbr.rel (%p160) target = $region12
      $region11: #{cnn_forward.1} parent=5 // pred_region
        %s164 = ssub.s32 %s14, 1
        // Predicated region
        $region13: #{cnn_forward.1} parent=11 // pred_check
          %p165 = pneg %p61
        $region14: #{cnn_forward.1} parent=11 // pred_check_branch
          %167 = sbr.rel (%p165) target = $region16
        $region15: #{cnn_forward.1} parent=11 // pred_region
          _
        $region16: #{cnn_forward.1} parent=11 // pred_fallthru
          _
        // Predicated region
        $region17: #{cnn_forward.1} parent=11 // pred_check
          %p168 = pneg %p82
        $region18: #{cnn_forward.1} parent=11 // pred_check_branch
          %170 = sbr.rel (%p168) target = $region20
        $region19: #{cnn_forward.1} parent=11 // pred_region
          _
        $region20: #{cnn_forward.1} parent=11 // pred_fallthru
          _
        // Predicated region
        $region21: #{cnn_forward.1} parent=11 // pred_check
          %p171 = pneg %p103
        $region22: #{cnn_forward.1} parent=11 // pred_check_branch
          %173 = sbr.rel (%p171) target = $region24
        $region23: #{cnn_forward.1} parent=11 // pred_region
          _
        $region24: #{cnn_forward.1} parent=11 // pred_fallthru
          _
        // Predicated region
        $region25: #{cnn_forward.1} parent=11 // pred_check
          %p174 = pneg %p124
        $region26: #{cnn_forward.1} parent=11 // pred_check_branch
          %176 = sbr.rel (%p174) target = $region28
        $region27: #{cnn_forward.1} parent=11 // pred_region
          _
        $region28: #{cnn_forward.1} parent=11 // pred_fallthru
          _
      $region12: #{cnn_forward.1} parent=5 // pred_fallthru
        _
      %p177 = scmp.lt.s32.totalorder %s14, 2
      // Predicated region
      $region29: #{cnn_forward.1} parent=5 // pred_check
        %p178 = pneg %p177
      $region30: #{cnn_forward.1} parent=5 // pred_check_branch
        %180 = sbr.rel (%p178) target = $region32
      $region31: #{cnn_forward.1} parent=5 // pred_region
        // Predicated region
        $region33: #{cnn_forward.1} parent=31 // pred_check
          %p181 = pneg %p34
        $region34: #{cnn_forward.1} parent=31 // pred_check_branch
          %183 = sbr.rel (%p181) target = $region36
        $region35: #{cnn_forward.1} parent=31 // pred_region
          %p184 = scmp.lt.s32.totalorder %s14, 1
          %s185 = scalar_select %p184, %s14, 1
          %s186 = smul.addr %s185, 17
          %s187 = smul.addr %s186, 8
          %s188 = scalar_lea.vmem %s0, %s187
        $region36: #{cnn_forward.1} parent=31 // pred_fallthru
          _
      $region32: #{cnn_forward.1} parent=5 // pred_fallthru
        _
      %p189 = scmp.le.s32.totalorder 1, %s14
      %p190 = scmp.lt.s32.totalorder %s14, 3
      %p191 = pnand %p189, %p190
      %p192 = pneg %p191
      // Predicated region
      $region37: #{cnn_forward.1} parent=5 // pred_check
        _
      $region38: #{cnn_forward.1} parent=5 // pred_check_branch
        %194 = sbr.rel (%p191) target = $region40
      $region39: #{cnn_forward.1} parent=5 // pred_region
        %s195 = ssub.s32 %s14, 1
        %p196 = scmp.lt.s32.totalorder %s19, 1
        %s197 = scalar_select %p196, %s19, 1
        %s198 = smul.addr %s197, 17
        %s199 = smul.addr %s198, 8
        %s200 = scalar_lea.vmem %s0, %s199
        %p201 = pneg %p40
        %p202 = pneg %p37
        %p203 = pneg %p61
        %p204 = pneg %p58
        %p205 = pneg %p82
        %p206 = pneg %p79
        %p207 = pneg %p103
        %p208 = pneg %p100
        %p209 = pneg %p124
        %p210 = pneg %p121
        %p211 = pneg %p150
        %p212 = pneg %p147
        %s213 = sand.u32 %s137, 1
        %s214 = scalar_lea.sflag [#allocation3], %s213
        %s215 = sand.u32 %s137, 1
        %s216 = smul.addr %s215, 8
        %s217 = scalar_lea.vmem [#allocation2], %s216
        %p218 = scmp.lt.s32.totalorder %s19, 1
        %s219 = scalar_select %p218, %s19, 1
        %s220 = smul.addr %s219, 17
        %s221 = smul.addr %s220, 8
        %s222 = scalar_lea.vmem %s0, %s221
        %v224 = vld [vmem:[%s222] sm:$0xff]
        %v225 = vld [vmem:[%s222 + $0x8] sm:$0xff]
        %v226 = vld [vmem:[%s222 + $0x10] sm:$0xff]
        %v227 = vld [vmem:[%s222 + $0x18] sm:$0xff]
        %v228 = vld [vmem:[%s222 + $0x20] sm:$0xff]
        %v229 = vld [vmem:[%s222 + $0x28] sm:$0xff]
        %v230 = vld [vmem:[%s222 + $0x30] sm:$0xff]
        %v231 = vld [vmem:[%s222 + $0x38] sm:$0xff]
        %v232 = vld [vmem:[%s222 + $0x40] sm:$0xff]
        %v233 = vld [vmem:[%s222 + $0x48] sm:$0xff]
        %v234 = vld [vmem:[%s222 + $0x50] sm:$0xff]
        %v235 = vld [vmem:[%s222 + $0x58] sm:$0xff]
        %v236 = vld [vmem:[%s222 + $0x60] sm:$0xff]
        %v237 = vld [vmem:[%s222 + $0x68] sm:$0xff]
        %v238 = vld [vmem:[%s222 + $0x70] sm:$0xff]
        %v239 = vld [vmem:[%s222 + $0x78] sm:$0xff]
        %v240 = vld [vmem:[%s222 + $0x80] sm:$0xff]
        %v241 = vpack.c.bf16 %v225, %v224
        %v242 = vpack.c.bf16 %v227, %v226
        %v243 = vpack.c.bf16 %v229, %v228
        %v244 = vpack.c.bf16 %v231, %v230
        %v245 = vpack.c.bf16 %v233, %v232
        %v246 = vpack.c.bf16 %v235, %v234
        %v247 = vpack.c.bf16 %v237, %v236
        %v248 = vpack.c.bf16 %v239, %v238
        %v249 = vpack.c.bf16 %v240, %v240
        %v250 = vld [vmem:[%s1] sm:$0xf]
        %v251 = vld [vmem:[%s1 + $0x4] sm:$0xf]
        %v252 = vld [vmem:[%s1 + $0x8] sm:$0xf]
        %v253 = vld [vmem:[%s1 + $0xc] sm:$0xf]
        %v254 = vld [vmem:[%s1 + $0x10] sm:$0xf]
        %v255 = vld [vmem:[%s1 + $0x14] sm:$0xf]
        %v256 = vld [vmem:[%s1 + $0x18] sm:$0xf]
        %v257 = vld [vmem:[%s1 + $0x1c] sm:$0xf]
        %v258 = vld [vmem:[%s1 + $0x20] sm:$0xf]
        %v259 = vld [vmem:[%s1 + $0x24] sm:$0xf]
        %v260 = vld [vmem:[%s1 + $0x28] sm:$0xf]
        %v261 = vld [vmem:[%s1 + $0x2c] sm:$0xf]
        %v262 = vld [vmem:[%s1 + $0x30] sm:$0xf]
        %v263 = vld [vmem:[%s1 + $0x34] sm:$0xf]
        %v264 = vld [vmem:[%s1 + $0x38] sm:$0xf]
        %v265 = vld [vmem:[%s1 + $0x3c] sm:$0xf]
        %s266 = scalar_lea.vmem %s1, 64
        %v267 = vld [vmem:[%s266] sm:$0xf]
        %v268 = vld [vmem:[%s266 + $0x4] sm:$0xf]
        %v269 = vld [vmem:[%s266 + $0x8] sm:$0xf]
        %v270 = vld [vmem:[%s266 + $0xc] sm:$0xf]
        %v271 = vld [vmem:[%s266 + $0x10] sm:$0xf]
        %v272 = vld [vmem:[%s266 + $0x14] sm:$0xf]
        %v273 = vld [vmem:[%s266 + $0x18] sm:$0xf]
        %v274 = vld [vmem:[%s266 + $0x1c] sm:$0xf]
        %v275 = vld [vmem:[%s266 + $0x20] sm:$0xf]
        %v276 = vld [vmem:[%s266 + $0x24] sm:$0xf]
        %v277 = vld [vmem:[%s266 + $0x28] sm:$0xf]
        %v278 = vld [vmem:[%s266 + $0x2c] sm:$0xf]
        %v279 = vld [vmem:[%s266 + $0x30] sm:$0xf]
        %v280 = vld [vmem:[%s266 + $0x34] sm:$0xf]
        %v281 = vld [vmem:[%s266 + $0x38] sm:$0xf]
        %v282 = vld [vmem:[%s266 + $0x3c] sm:$0xf]
        %vm283 = vsmask.f32 7424
        %v285 = vshrl.u32 %v241, 16
        %v287 = vshll.u32 %v241, 16
        %v289 = vrot.slane %v287, 1
        %v290 = vor.u32 %v285, %v289
        %v292 = vshll.u32 %v242, 16
        %v294 = vrot.slane %v292, 1
        %v295 = vsel %vm283, %v290, %v294
        %v296 = vshrl.u32 %v242, 16
        %v298 = vor.u32 %v296, %v294
        %v300 = vshll.u32 %v243, 16
        %v302 = vrot.slane %v300, 1
        %v303 = vsel %vm283, %v298, %v302
        %v304 = vshrl.u32 %v243, 16
        %v306 = vor.u32 %v304, %v302
        %v308 = vshll.u32 %v244, 16
        %v310 = vrot.slane %v308, 1
        %v311 = vsel %vm283, %v306, %v310
        %v312 = vshrl.u32 %v244, 16
        %v314 = vor.u32 %v312, %v310
        %v316 = vshll.u32 %v245, 16
        %v318 = vrot.slane %v316, 1
        %v319 = vsel %vm283, %v314, %v318
        %v320 = vshrl.u32 %v245, 16
        %v322 = vor.u32 %v320, %v318
        %v324 = vshll.u32 %v246, 16
        %v326 = vrot.slane %v324, 1
        %v327 = vsel %vm283, %v322, %v326
        %v328 = vshrl.u32 %v246, 16
        %v330 = vor.u32 %v328, %v326
        %v332 = vshll.u32 %v247, 16
        %v334 = vrot.slane %v332, 1
        %v335 = vsel %vm283, %v330, %v334
        %v336 = vshrl.u32 %v247, 16
        %v338 = vor.u32 %v336, %v334
        %v340 = vshll.u32 %v248, 16
        %v342 = vrot.slane %v340, 1
        %v343 = vsel %vm283, %v338, %v342
        %v344 = vshrl.u32 %v248, 16
        %v346 = vor.u32 %v344, %v342
        %v348 = vshll.u32 %v249, 16
        %v350 = vrot.slane %v348, 1
        %v351 = vsel %vm283, %v346, %v350
        %v352 = vshrl.u32 %v249, 16
        %v354 = vor.u32 %v352, %v350
        %v380 = vunpack.c.l.b16 %v267
        %v381 = vunpack.c.l.b16 %v268
        %v382 = vunpack.c.l.b16 %v269
        %v383 = vunpack.c.l.b16 %v270
        %v384 = vunpack.c.l.b16 %v271
        %v385 = vunpack.c.l.b16 %v272
        %v386 = vunpack.c.l.b16 %v273
        %v387 = vunpack.c.l.b16 %v274
        %v388 = vunpack.c.l.b16 %v275
        %v389 = vunpack.c.l.b16 %v276
        %v390 = vunpack.c.l.b16 %v277
        %v391 = vunpack.c.l.b16 %v278
        %v392 = vunpack.c.l.b16 %v279
        %v393 = vunpack.c.l.b16 %v280
        %v394 = vunpack.c.l.b16 %v281
        %v395 = vunpack.c.l.b16 %v282
        %v396 = vpack.c.b16 %v381, %v380
        %v397 = vpack.c.b16 %v383, %v382
        %v398 = vpack.c.b16 %v385, %v384
        %v399 = vpack.c.b16 %v387, %v386
        %v400 = vpack.c.b16 %v389, %v388
        %v401 = vpack.c.b16 %v391, %v390
        %v402 = vpack.c.b16 %v393, %v392
        %v403 = vpack.c.b16 %v395, %v394
        %412 = vmatprep.subr.bf16.mxu0 0
        %413 = vmatpush1.bf16.msra.mxu0 %v403
        %414 = vmatprep.subr.bf16.mxu0 0
        %415 = vmatpush1.bf16.msra.mxu0 %v402
        %416 = vmatprep.subr.bf16.mxu0 0
        %417 = vmatpush1.bf16.msra.mxu0 %v401
        %418 = vmatprep.subr.bf16.mxu0 0
        %419 = vmatpush1.bf16.msra.mxu0 %v400
        %420 = vmatprep.subr.bf16.mxu0 0
        %421 = vmatpush1.bf16.msra.mxu0 %v399
        %422 = vmatprep.subr.bf16.mxu0 0
        %423 = vmatpush1.bf16.msra.mxu0 %v398
        %424 = vmatprep.subr.bf16.mxu0 0
        %425 = vmatpush1.bf16.msra.mxu0 %v397
        %426 = vmatprep.subr.bf16.mxu0 0
        %427 = vmatpush1.bf16.msra.mxu0 %v396
        %428 = vmatprep.subr.bf16.mxu0 0
        %429 = vmatpush2.bf16.msra.mxu0 0
        %430 = vmatprep.subr.bf16.mxu0 0
        %431 = vmatpush2.bf16.msra.mxu0 0
        %432 = vmatprep.subr.bf16.mxu0 0
        %433 = vmatpush2.bf16.msra.mxu0 0
        %434 = vmatprep.subr.bf16.mxu0 0
        %435 = vmatpush2.bf16.msra.mxu0 0
        %436 = vmatprep.subr.bf16.mxu0 0
        %437 = vmatpush2.bf16.msra.mxu0 0
        %438 = vmatprep.subr.bf16.mxu0 0
        %439 = vmatpush2.bf16.msra.mxu0 0
        %440 = vmatprep.subr.bf16.mxu0 0
        %441 = vmatpush2.bf16.msra.mxu0 0
        %442 = vmatprep.subr.bf16.mxu0 0
        %443 = vmatpush2.bf16.msra.mxu0 0
        %444 = vmatprep.mubr.bf16.mxu0 0
        %445 = vmatmul.mubr.bf16.gmra.mxu0 %v295
        %v446 = vpop.f32.mrf.mxu0
        %v447 = vadd.f32 0.0, %v446
        %v448 = vpop.f32.mrf.mxu0
        %v449 = vpop.f32.mrf.mxu0
        %v450 = vadd.f32 0.0, %v449
        %v451 = vpop.f32.mrf.mxu0
        %452 = vmatprep.mubr.bf16.mxu0 0
        %453 = vmatmul.mubr.bf16.gmra.mxu0 %v303
        %v454 = vpop.f32.mrf.mxu0
        %v455 = vadd.f32 0.0, %v454
        %v456 = vpop.f32.mrf.mxu0
        %v457 = vpop.f32.mrf.mxu0
        %v458 = vadd.f32 0.0, %v457
        %v459 = vpop.f32.mrf.mxu0
        %460 = vmatprep.mubr.bf16.mxu0 0
        %461 = vmatmul.mubr.bf16.gmra.mxu0 %v311
        %v462 = vpop.f32.mrf.mxu0
        %v463 = vadd.f32 0.0, %v462
        %v464 = vpop.f32.mrf.mxu0
        %v465 = vpop.f32.mrf.mxu0
        %v466 = vadd.f32 0.0, %v465
        %v467 = vpop.f32.mrf.mxu0
        %468 = vmatprep.mubr.bf16.mxu0 0
        %469 = vmatmul.mubr.bf16.gmra.mxu0 %v319
        %v470 = vpop.f32.mrf.mxu0
        %v471 = vadd.f32 0.0, %v470
        %v472 = vpop.f32.mrf.mxu0
        %v473 = vpop.f32.mrf.mxu0
        %v474 = vadd.f32 0.0, %v473
        %v475 = vpop.f32.mrf.mxu0
        %476 = vmatprep.mubr.bf16.mxu0 0
        %477 = vmatmul.mubr.bf16.gmra.mxu0 %v327
        %v478 = vpop.f32.mrf.mxu0
        %v479 = vadd.f32 0.0, %v478
        %v480 = vpop.f32.mrf.mxu0
        %v481 = vpop.f32.mrf.mxu0
        %v482 = vadd.f32 0.0, %v481
        %v483 = vpop.f32.mrf.mxu0
        %484 = vmatprep.mubr.bf16.mxu0 0
        %485 = vmatmul.mubr.bf16.gmra.mxu0 %v335
        %v486 = vpop.f32.mrf.mxu0
        %v487 = vadd.f32 0.0, %v486
        %v488 = vpop.f32.mrf.mxu0
        %v489 = vpop.f32.mrf.mxu0
        %v490 = vadd.f32 0.0, %v489
        %v491 = vpop.f32.mrf.mxu0
        %492 = vmatprep.mubr.bf16.mxu0 0
        %493 = vmatmul.mubr.bf16.gmra.mxu0 %v343
        %v494 = vpop.f32.mrf.mxu0
        %v495 = vadd.f32 0.0, %v494
        %v496 = vpop.f32.mrf.mxu0
        %v497 = vpop.f32.mrf.mxu0
        %v498 = vadd.f32 0.0, %v497
        %v499 = vpop.f32.mrf.mxu0
        %500 = vmatprep.mubr.bf16.mxu0 0
        %501 = vmatmul.mubr.bf16.gmra.mxu0 %v351
        %v502 = vpop.f32.mrf.mxu0
        %v503 = vadd.f32 0.0, %v502
        %v504 = vpop.f32.mrf.mxu0
        %v505 = vpop.f32.mrf.mxu0
        %v506 = vadd.f32 0.0, %v505
        %v507 = vpop.f32.mrf.mxu0
        %508 = vmatprep.mubr.bf16.mxu0 0
        %509 = vmatmul.mubr.bf16.gmra.mxu0 %v354
        %v510 = vpop.f32.mrf.mxu0
        %v511 = vadd.f32 0.0, %v510
        %v512 = vpop.f32.mrf.mxu0
        %v513 = vpop.f32.mrf.mxu0
        %v514 = vpop.f32.mrf.mxu0
        %515 = vdwg.mxu0
        %v532 = vunpack.c.l.b16 %v250
        %v533 = vunpack.c.l.b16 %v251
        %v534 = vunpack.c.l.b16 %v252
        %v535 = vunpack.c.l.b16 %v253
        %v536 = vunpack.c.l.b16 %v254
        %v537 = vunpack.c.l.b16 %v255
        %v538 = vunpack.c.l.b16 %v256
        %v539 = vunpack.c.l.b16 %v257
        %v540 = vunpack.c.l.b16 %v258
        %v541 = vunpack.c.l.b16 %v259
        %v542 = vunpack.c.l.b16 %v260
        %v543 = vunpack.c.l.b16 %v261
        %v544 = vunpack.c.l.b16 %v262
        %v545 = vunpack.c.l.b16 %v263
        %v546 = vunpack.c.l.b16 %v264
        %v547 = vunpack.c.l.b16 %v265
        %v548 = vpack.c.b16 %v533, %v532
        %v549 = vpack.c.b16 %v535, %v534
        %v550 = vpack.c.b16 %v537, %v536
        %v551 = vpack.c.b16 %v539, %v538
        %v552 = vpack.c.b16 %v541, %v540
        %v553 = vpack.c.b16 %v543, %v542
        %v554 = vpack.c.b16 %v545, %v544
        %v555 = vpack.c.b16 %v547, %v546
        %564 = vmatprep.subr.bf16.mxu0 0
        %565 = vmatpush1.bf16.msra.mxu0 %v555
        %566 = vmatprep.subr.bf16.mxu0 0
        %567 = vmatpush1.bf16.msra.mxu0 %v554
        %568 = vmatprep.subr.bf16.mxu0 0
        %569 = vmatpush1.bf16.msra.mxu0 %v553
        %570 = vmatprep.subr.bf16.mxu0 0
        %571 = vmatpush1.bf16.msra.mxu0 %v552
        %572 = vmatprep.subr.bf16.mxu0 0
        %573 = vmatpush1.bf16.msra.mxu0 %v551
        %574 = vmatprep.subr.bf16.mxu0 0
        %575 = vmatpush1.bf16.msra.mxu0 %v550
        %576 = vmatprep.subr.bf16.mxu0 0
        %577 = vmatpush1.bf16.msra.mxu0 %v549
        %578 = vmatprep.subr.bf16.mxu0 0
        %579 = vmatpush1.bf16.msra.mxu0 %v548
        %580 = vmatprep.subr.bf16.mxu0 0
        %581 = vmatpush2.bf16.msra.mxu0 0
        %582 = vmatprep.subr.bf16.mxu0 0
        %583 = vmatpush2.bf16.msra.mxu0 0
        %584 = vmatprep.subr.bf16.mxu0 0
        %585 = vmatpush2.bf16.msra.mxu0 0
        %586 = vmatprep.subr.bf16.mxu0 0
        %587 = vmatpush2.bf16.msra.mxu0 0
        %588 = vmatprep.subr.bf16.mxu0 0
        %589 = vmatpush2.bf16.msra.mxu0 0
        %590 = vmatprep.subr.bf16.mxu0 0
        %591 = vmatpush2.bf16.msra.mxu0 0
        %592 = vmatprep.subr.bf16.mxu0 0
        %593 = vmatpush2.bf16.msra.mxu0 0
        %594 = vmatprep.subr.bf16.mxu0 0
        %595 = vmatpush2.bf16.msra.mxu0 0
        %596 = vmatprep.mubr.bf16.mxu0 0
        %597 = vmatmul.mubr.bf16.gmra.mxu0 %v241
        %v598 = vpop.f32.mrf.mxu0
        %v599 = vadd.f32 %v447, %v598
        %v600 = vpop.f32.mrf.mxu0
        %v601 = vpop.f32.mrf.mxu0
        %v602 = vadd.f32 %v450, %v601
        %v603 = vpop.f32.mrf.mxu0
        %604 = vmatprep.mubr.bf16.mxu0 0
        %605 = vmatmul.mubr.bf16.gmra.mxu0 %v242
        %v606 = vpop.f32.mrf.mxu0
        %v607 = vadd.f32 %v455, %v606
        %v608 = vpop.f32.mrf.mxu0
        %v609 = vpop.f32.mrf.mxu0
        %v610 = vadd.f32 %v458, %v609
        %v611 = vpop.f32.mrf.mxu0
        %612 = vmatprep.mubr.bf16.mxu0 0
        %613 = vmatmul.mubr.bf16.gmra.mxu0 %v243
        %v614 = vpop.f32.mrf.mxu0
        %v615 = vadd.f32 %v463, %v614
        %v616 = vpop.f32.mrf.mxu0
        %v617 = vpop.f32.mrf.mxu0
        %v618 = vadd.f32 %v466, %v617
        %v619 = vpop.f32.mrf.mxu0
        %620 = vmatprep.mubr.bf16.mxu0 0
        %621 = vmatmul.mubr.bf16.gmra.mxu0 %v244
        %v622 = vpop.f32.mrf.mxu0
        %v623 = vadd.f32 %v471, %v622
        %v624 = vpop.f32.mrf.mxu0
        %v625 = vpop.f32.mrf.mxu0
        %v626 = vadd.f32 %v474, %v625
        %v627 = vpop.f32.mrf.mxu0
        %628 = vmatprep.mubr.bf16.mxu0 0
        %629 = vmatmul.mubr.bf16.gmra.mxu0 %v245
        %v630 = vpop.f32.mrf.mxu0
        %v631 = vadd.f32 %v479, %v630
        %v632 = vpop.f32.mrf.mxu0
        %v633 = vpop.f32.mrf.mxu0
        %v634 = vadd.f32 %v482, %v633
        %v635 = vpop.f32.mrf.mxu0
        %636 = vmatprep.mubr.bf16.mxu0 0
        %637 = vmatmul.mubr.bf16.gmra.mxu0 %v246
        %v638 = vpop.f32.mrf.mxu0
        %v639 = vadd.f32 %v487, %v638
        %v640 = vpop.f32.mrf.mxu0
        %v641 = vpop.f32.mrf.mxu0
        %v642 = vadd.f32 %v490, %v641
        %v643 = vpop.f32.mrf.mxu0
        %644 = vmatprep.mubr.bf16.mxu0 0
        %645 = vmatmul.mubr.bf16.gmra.mxu0 %v247
        %v646 = vpop.f32.mrf.mxu0
        %v647 = vadd.f32 %v495, %v646
        %v648 = vpop.f32.mrf.mxu0
        %v649 = vpop.f32.mrf.mxu0
        %v650 = vadd.f32 %v498, %v649
        %v651 = vpop.f32.mrf.mxu0
        %652 = vmatprep.mubr.bf16.mxu0 0
        %653 = vmatmul.mubr.bf16.gmra.mxu0 %v248
        %v654 = vpop.f32.mrf.mxu0
        %v655 = vadd.f32 %v503, %v654
        %v656 = vpop.f32.mrf.mxu0
        %v657 = vpop.f32.mrf.mxu0
        %v658 = vadd.f32 %v506, %v657
        %v659 = vpop.f32.mrf.mxu0
        %660 = vmatprep.mubr.bf16.mxu0 0
        %661 = vmatmul.mubr.bf16.gmra.mxu0 %v249
        %v662 = vpop.f32.mrf.mxu0
        %v663 = vadd.f32 %v511, %v662
        %v664 = vpop.f32.mrf.mxu0
        %v665 = vpop.f32.mrf.mxu0
        %v666 = vpop.f32.mrf.mxu0
        %667 = vdwg.mxu0
        %s668 = scalar_lea.vmem %s1, 128
        %v669 = vld [vmem:[%s668] sm:$0xf]
        %v670 = vld [vmem:[%s668 + $0x4] sm:$0xf]
        %v671 = vld [vmem:[%s668 + $0x8] sm:$0xf]
        %v672 = vld [vmem:[%s668 + $0xc] sm:$0xf]
        %v673 = vld [vmem:[%s668 + $0x10] sm:$0xf]
        %v674 = vld [vmem:[%s668 + $0x14] sm:$0xf]
        %v675 = vld [vmem:[%s668 + $0x18] sm:$0xf]
        %v676 = vld [vmem:[%s668 + $0x1c] sm:$0xf]
        %v677 = vld [vmem:[%s668 + $0x20] sm:$0xf]
        %v678 = vld [vmem:[%s668 + $0x24] sm:$0xf]
        %v679 = vld [vmem:[%s668 + $0x28] sm:$0xf]
        %v680 = vld [vmem:[%s668 + $0x2c] sm:$0xf]
        %v681 = vld [vmem:[%s668 + $0x30] sm:$0xf]
        %v682 = vld [vmem:[%s668 + $0x34] sm:$0xf]
        %v683 = vld [vmem:[%s668 + $0x38] sm:$0xf]
        %v684 = vld [vmem:[%s668 + $0x3c] sm:$0xf]
        %vm694 = vcmask 1046528
        %v695 = vrot.slane %v241, 1
        %v696 = vrot.slane %v242, 1
        %v697 = vsel %vm694, %v695, %v696
        %v698 = vrot.slane %v243, 1
        %v699 = vsel %vm694, %v696, %v698
        %v700 = vrot.slane %v244, 1
        %v701 = vsel %vm694, %v698, %v700
        %v702 = vrot.slane %v245, 1
        %v703 = vsel %vm694, %v700, %v702
        %v704 = vrot.slane %v246, 1
        %v705 = vsel %vm694, %v702, %v704
        %v706 = vrot.slane %v247, 1
        %v707 = vsel %vm694, %v704, %v706
        %v708 = vrot.slane %v248, 1
        %v709 = vsel %vm694, %v706, %v708
        %v710 = vrot.slane %v249, 1
        %v711 = vsel %vm694, %v708, %v710
        %v737 = vunpack.c.l.b16 %v669
        %v738 = vunpack.c.l.b16 %v670
        %v739 = vunpack.c.l.b16 %v671
        %v740 = vunpack.c.l.b16 %v672
        %v741 = vunpack.c.l.b16 %v673
        %v742 = vunpack.c.l.b16 %v674
        %v743 = vunpack.c.l.b16 %v675
        %v744 = vunpack.c.l.b16 %v676
        %v745 = vunpack.c.l.b16 %v677
        %v746 = vunpack.c.l.b16 %v678
        %v747 = vunpack.c.l.b16 %v679
        %v748 = vunpack.c.l.b16 %v680
        %v749 = vunpack.c.l.b16 %v681
        %v750 = vunpack.c.l.b16 %v682
        %v751 = vunpack.c.l.b16 %v683
        %v752 = vunpack.c.l.b16 %v684
        %v753 = vpack.c.b16 %v738, %v737
        %v754 = vpack.c.b16 %v740, %v739
        %v755 = vpack.c.b16 %v742, %v741
        %v756 = vpack.c.b16 %v744, %v743
        %v757 = vpack.c.b16 %v746, %v745
        %v758 = vpack.c.b16 %v748, %v747
        %v759 = vpack.c.b16 %v750, %v749
        %v760 = vpack.c.b16 %v752, %v751
        %769 = vmatprep.subr.bf16.mxu0 0
        %770 = vmatpush1.bf16.msra.mxu0 %v760
        %771 = vmatprep.subr.bf16.mxu0 0
        %772 = vmatpush1.bf16.msra.mxu0 %v759
        %773 = vmatprep.subr.bf16.mxu0 0
        %774 = vmatpush1.bf16.msra.mxu0 %v758
        %775 = vmatprep.subr.bf16.mxu0 0
        %776 = vmatpush1.bf16.msra.mxu0 %v757
        %777 = vmatprep.subr.bf16.mxu0 0
        %778 = vmatpush1.bf16.msra.mxu0 %v756
        %779 = vmatprep.subr.bf16.mxu0 0
        %780 = vmatpush1.bf16.msra.mxu0 %v755
        %781 = vmatprep.subr.bf16.mxu0 0
        %782 = vmatpush1.bf16.msra.mxu0 %v754
        %783 = vmatprep.subr.bf16.mxu0 0
        %784 = vmatpush1.bf16.msra.mxu0 %v753
        %785 = vmatprep.subr.bf16.mxu0 0
        %786 = vmatpush2.bf16.msra.mxu0 0
        %787 = vmatprep.subr.bf16.mxu0 0
        %788 = vmatpush2.bf16.msra.mxu0 0
        %789 = vmatprep.subr.bf16.mxu0 0
        %790 = vmatpush2.bf16.msra.mxu0 0
        %791 = vmatprep.subr.bf16.mxu0 0
        %792 = vmatpush2.bf16.msra.mxu0 0
        %793 = vmatprep.subr.bf16.mxu0 0
        %794 = vmatpush2.bf16.msra.mxu0 0
        %795 = vmatprep.subr.bf16.mxu0 0
        %796 = vmatpush2.bf16.msra.mxu0 0
        %797 = vmatprep.subr.bf16.mxu0 0
        %798 = vmatpush2.bf16.msra.mxu0 0
        %799 = vmatprep.subr.bf16.mxu0 0
        %800 = vmatpush2.bf16.msra.mxu0 0
        %801 = vmatprep.mubr.bf16.mxu0 0
        %802 = vmatmul.mubr.bf16.gmra.mxu0 %v697
        %v803 = vpop.f32.mrf.mxu0
        %v804 = vadd.f32 0.0, %v803
        %v805 = vpop.f32.mrf.mxu0
        %v806 = vpop.f32.mrf.mxu0
        %v807 = vadd.f32 0.0, %v806
        %v808 = vpop.f32.mrf.mxu0
        %809 = vmatprep.mubr.bf16.mxu0 0
        %810 = vmatmul.mubr.bf16.gmra.mxu0 %v699
        %v811 = vpop.f32.mrf.mxu0
        %v812 = vadd.f32 0.0, %v811
        %v813 = vpop.f32.mrf.mxu0
        %v814 = vpop.f32.mrf.mxu0
        %v815 = vadd.f32 0.0, %v814
        %v816 = vpop.f32.mrf.mxu0
        %817 = vmatprep.mubr.bf16.mxu0 0
        %818 = vmatmul.mubr.bf16.gmra.mxu0 %v701
        %v819 = vpop.f32.mrf.mxu0
        %v820 = vadd.f32 0.0, %v819
        %v821 = vpop.f32.mrf.mxu0
        %v822 = vpop.f32.mrf.mxu0
        %v823 = vadd.f32 0.0, %v822
        %v824 = vpop.f32.mrf.mxu0
        %825 = vmatprep.mubr.bf16.mxu0 0
        %826 = vmatmul.mubr.bf16.gmra.mxu0 %v703
        %v827 = vpop.f32.mrf.mxu0
        %v828 = vadd.f32 0.0, %v827
        %v829 = vpop.f32.mrf.mxu0
        %v830 = vpop.f32.mrf.mxu0
        %v831 = vadd.f32 0.0, %v830
        %v832 = vpop.f32.mrf.mxu0
        %833 = vmatprep.mubr.bf16.mxu0 0
        %834 = vmatmul.mubr.bf16.gmra.mxu0 %v705
        %v835 = vpop.f32.mrf.mxu0
        %v836 = vadd.f32 0.0, %v835
        %v837 = vpop.f32.mrf.mxu0
        %v838 = vpop.f32.mrf.mxu0
        %v839 = vadd.f32 0.0, %v838
        %v840 = vpop.f32.mrf.mxu0
        %841 = vmatprep.mubr.bf16.mxu0 0
        %842 = vmatmul.mubr.bf16.gmra.mxu0 %v707
        %v843 = vpop.f32.mrf.mxu0
        %v844 = vadd.f32 0.0, %v843
        %v845 = vpop.f32.mrf.mxu0
        %v846 = vpop.f32.mrf.mxu0
        %v847 = vadd.f32 0.0, %v846
        %v848 = vpop.f32.mrf.mxu0
        %849 = vmatprep.mubr.bf16.mxu0 0
        %850 = vmatmul.mubr.bf16.gmra.mxu0 %v709
        %v851 = vpop.f32.mrf.mxu0
        %v852 = vadd.f32 0.0, %v851
        %v853 = vpop.f32.mrf.mxu0
        %v854 = vpop.f32.mrf.mxu0
        %v855 = vadd.f32 0.0, %v854
        %v856 = vpop.f32.mrf.mxu0
        %857 = vmatprep.mubr.bf16.mxu0 0
        %858 = vmatmul.mubr.bf16.gmra.mxu0 %v711
        %v859 = vpop.f32.mrf.mxu0
        %v860 = vadd.f32 0.0, %v859
        %v861 = vpop.f32.mrf.mxu0
        %v862 = vpop.f32.mrf.mxu0
        %v863 = vadd.f32 0.0, %v862
        %v864 = vpop.f32.mrf.mxu0
        %865 = vmatprep.mubr.bf16.mxu0 0
        %866 = vmatmul.mubr.bf16.gmra.mxu0 %v710
        %v867 = vpop.f32.mrf.mxu0
        %v868 = vadd.f32 0.0, %v867
        %v869 = vpop.f32.mrf.mxu0
        %v870 = vpop.f32.mrf.mxu0
        %v871 = vpop.f32.mrf.mxu0
        %872 = vdwg.mxu0
        %v873 = vadd.f32 %v599, %v804
        %v874 = vadd.f32 %v602, %v807
        %v875 = vadd.f32 %v607, %v812
        %v876 = vadd.f32 %v610, %v815
        %v877 = vadd.f32 %v615, %v820
        %v878 = vadd.f32 %v618, %v823
        %v879 = vadd.f32 %v623, %v828
        %v880 = vadd.f32 %v626, %v831
        %v881 = vadd.f32 %v631, %v836
        %v882 = vadd.f32 %v634, %v839
        %v883 = vadd.f32 %v639, %v844
        %v884 = vadd.f32 %v642, %v847
        %v885 = vadd.f32 %v647, %v852
        %v886 = vadd.f32 %v650, %v855
        %v887 = vadd.f32 %v655, %v860
        %v888 = vadd.f32 %v658, %v863
        %v889 = vadd.f32 %v663, %v868
        %v890 = vld [vmem:[%s2] sm:$0x1]
        %v891 = vlaneseq
        %v892 = vshrl.u32 %v891, 7
        %v893 = vsub.s32 0, %v892
        %v894 = vrot.slane %v890, %v893
        %v895 = vadd.f32 %v873, %v894
        %v896 = vadd.f32 %v874, %v894
        %v897 = vadd.f32 %v875, %v894
        %v898 = vadd.f32 %v876, %v894
        %v899 = vadd.f32 %v877, %v894
        %v900 = vadd.f32 %v878, %v894
        %v901 = vadd.f32 %v879, %v894
        %v902 = vadd.f32 %v880, %v894
        %v903 = vadd.f32 %v881, %v894
        %v904 = vadd.f32 %v882, %v894
        %v905 = vadd.f32 %v883, %v894
        %v906 = vadd.f32 %v884, %v894
        %v907 = vadd.f32 %v885, %v894
        %v908 = vadd.f32 %v886, %v894
        %v909 = vadd.f32 %v887, %v894
        %v910 = vadd.f32 %v888, %v894
        %v911 = vadd.f32 %v889, %v894
        %v912 = vmax.f32 %v895, 0.0
        %v913 = vmax.f32 %v896, 0.0
        %v914 = vmax.f32 %v897, 0.0
        %v915 = vmax.f32 %v898, 0.0
        %v916 = vmax.f32 %v899, 0.0
        %v917 = vmax.f32 %v900, 0.0
        %v918 = vmax.f32 %v901, 0.0
        %v919 = vmax.f32 %v902, 0.0
        %v920 = vmax.f32 %v903, 0.0
        %v921 = vmax.f32 %v904, 0.0
        %v922 = vmax.f32 %v905, 0.0
        %v923 = vmax.f32 %v906, 0.0
        %v924 = vmax.f32 %v907, 0.0
        %v925 = vmax.f32 %v908, 0.0
        %v926 = vmax.f32 %v909, 0.0
        %v927 = vmax.f32 %v910, 0.0
        %v928 = vmax.f32 %v911, 0.0
        %v929 = vpack.c.bf16 %v913, %v912
        %v930 = vpack.c.bf16 %v915, %v914
        %v931 = vpack.c.bf16 %v917, %v916
        %v932 = vpack.c.bf16 %v919, %v918
        %v933 = vpack.c.bf16 %v921, %v920
        %v934 = vpack.c.bf16 %v923, %v922
        %v935 = vpack.c.bf16 %v925, %v924
        %v936 = vpack.c.bf16 %v927, %v926
        %v937 = vpack.c.bf16 %v928, %v928
        %s938 = scalar_lea.vmem %s1, 192
        %v939 = vld [vmem:[%s938] sm:$0xf]
        %v940 = vld [vmem:[%s938 + $0x4] sm:$0xf]
        %v941 = vld [vmem:[%s938 + $0x8] sm:$0xf]
        %v942 = vld [vmem:[%s938 + $0xc] sm:$0xf]
        %v943 = vld [vmem:[%s938 + $0x10] sm:$0xf]
        %v944 = vld [vmem:[%s938 + $0x14] sm:$0xf]
        %v945 = vld [vmem:[%s938 + $0x18] sm:$0xf]
        %v946 = vld [vmem:[%s938 + $0x1c] sm:$0xf]
        %v947 = vld [vmem:[%s938 + $0x20] sm:$0xf]
        %v948 = vld [vmem:[%s938 + $0x24] sm:$0xf]
        %v949 = vld [vmem:[%s938 + $0x28] sm:$0xf]
        %v950 = vld [vmem:[%s938 + $0x2c] sm:$0xf]
        %v951 = vld [vmem:[%s938 + $0x30] sm:$0xf]
        %v952 = vld [vmem:[%s938 + $0x34] sm:$0xf]
        %v953 = vld [vmem:[%s938 + $0x38] sm:$0xf]
        %v954 = vld [vmem:[%s938 + $0x3c] sm:$0xf]
        %s955 = scalar_lea.vmem %s1, 256
        %v956 = vld [vmem:[%s955] sm:$0xf]
        %v957 = vld [vmem:[%s955 + $0x4] sm:$0xf]
        %v958 = vld [vmem:[%s955 + $0x8] sm:$0xf]
        %v959 = vld [vmem:[%s955 + $0xc] sm:$0xf]
        %v960 = vld [vmem:[%s955 + $0x10] sm:$0xf]
        %v961 = vld [vmem:[%s955 + $0x14] sm:$0xf]
        %v962 = vld [vmem:[%s955 + $0x18] sm:$0xf]
        %v963 = vld [vmem:[%s955 + $0x1c] sm:$0xf]
        %v964 = vld [vmem:[%s955 + $0x20] sm:$0xf]
        %v965 = vld [vmem:[%s955 + $0x24] sm:$0xf]
        %v966 = vld [vmem:[%s955 + $0x28] sm:$0xf]
        %v967 = vld [vmem:[%s955 + $0x2c] sm:$0xf]
        %v968 = vld [vmem:[%s955 + $0x30] sm:$0xf]
        %v969 = vld [vmem:[%s955 + $0x34] sm:$0xf]
        %v970 = vld [vmem:[%s955 + $0x38] sm:$0xf]
        %v971 = vld [vmem:[%s955 + $0x3c] sm:$0xf]
        %v973 = vshrl.u32 %v929, 16
        %v975 = vshll.u32 %v929, 16
        %v977 = vrot.slane %v975, 1
        %v978 = vor.u32 %v973, %v977
        %v980 = vshll.u32 %v930, 16
        %v982 = vrot.slane %v980, 1
        %v983 = vsel %vm283, %v978, %v982
        %v984 = vshrl.u32 %v930, 16
        %v986 = vor.u32 %v984, %v982
        %v988 = vshll.u32 %v931, 16
        %v990 = vrot.slane %v988, 1
        %v991 = vsel %vm283, %v986, %v990
        %v992 = vshrl.u32 %v931, 16
        %v994 = vor.u32 %v992, %v990
        %v996 = vshll.u32 %v932, 16
        %v998 = vrot.slane %v996, 1
        %v999 = vsel %vm283, %v994, %v998
        %v1000 = vshrl.u32 %v932, 16
        %v1002 = vor.u32 %v1000, %v998
        %v1004 = vshll.u32 %v933, 16
        %v1006 = vrot.slane %v1004, 1
        %v1007 = vsel %vm283, %v1002, %v1006
        %v1008 = vshrl.u32 %v933, 16
        %v1010 = vor.u32 %v1008, %v1006
        %v1012 = vshll.u32 %v934, 16
        %v1014 = vrot.slane %v1012, 1
        %v1015 = vsel %vm283, %v1010, %v1014
        %v1016 = vshrl.u32 %v934, 16
        %v1018 = vor.u32 %v1016, %v1014
        %v1020 = vshll.u32 %v935, 16
        %v1022 = vrot.slane %v1020, 1
        %v1023 = vsel %vm283, %v1018, %v1022
        %v1024 = vshrl.u32 %v935, 16
        %v1026 = vor.u32 %v1024, %v1022
        %v1028 = vshll.u32 %v936, 16
        %v1030 = vrot.slane %v1028, 1
        %v1031 = vsel %vm283, %v1026, %v1030
        %v1032 = vshrl.u32 %v936, 16
        %v1034 = vor.u32 %v1032, %v1030
        %v1036 = vshll.u32 %v937, 16
        %v1038 = vrot.slane %v1036, 1
        %v1039 = vsel %vm283, %v1034, %v1038
        %v1040 = vshrl.u32 %v937, 16
        %v1042 = vor.u32 %v1040, %v1038
        %v1068 = vunpack.c.l.b16 %v956
        %v1069 = vunpack.c.l.b16 %v957
        %v1070 = vunpack.c.l.b16 %v958
        %v1071 = vunpack.c.l.b16 %v959
        %v1072 = vunpack.c.l.b16 %v960
        %v1073 = vunpack.c.l.b16 %v961
        %v1074 = vunpack.c.l.b16 %v962
        %v1075 = vunpack.c.l.b16 %v963
        %v1076 = vunpack.c.l.b16 %v964
        %v1077 = vunpack.c.l.b16 %v965
        %v1078 = vunpack.c.l.b16 %v966
        %v1079 = vunpack.c.l.b16 %v967
        %v1080 = vunpack.c.l.b16 %v968
        %v1081 = vunpack.c.l.b16 %v969
        %v1082 = vunpack.c.l.b16 %v970
        %v1083 = vunpack.c.l.b16 %v971
        %v1084 = vpack.c.b16 %v1069, %v1068
        %v1085 = vpack.c.b16 %v1071, %v1070
        %v1086 = vpack.c.b16 %v1073, %v1072
        %v1087 = vpack.c.b16 %v1075, %v1074
        %v1088 = vpack.c.b16 %v1077, %v1076
        %v1089 = vpack.c.b16 %v1079, %v1078
        %v1090 = vpack.c.b16 %v1081, %v1080
        %v1091 = vpack.c.b16 %v1083, %v1082
        %1100 = vmatprep.subr.bf16.mxu0 0
        %1101 = vmatpush1.bf16.msra.mxu0 %v1091
        %1102 = vmatprep.subr.bf16.mxu0 0
        %1103 = vmatpush1.bf16.msra.mxu0 %v1090
        %1104 = vmatprep.subr.bf16.mxu0 0
        %1105 = vmatpush1.bf16.msra.mxu0 %v1089
        %1106 = vmatprep.subr.bf16.mxu0 0
        %1107 = vmatpush1.bf16.msra.mxu0 %v1088
        %1108 = vmatprep.subr.bf16.mxu0 0
        %1109 = vmatpush1.bf16.msra.mxu0 %v1087
        %1110 = vmatprep.subr.bf16.mxu0 0
        %1111 = vmatpush1.bf16.msra.mxu0 %v1086
        %1112 = vmatprep.subr.bf16.mxu0 0
        %1113 = vmatpush1.bf16.msra.mxu0 %v1085
        %1114 = vmatprep.subr.bf16.mxu0 0
        %1115 = vmatpush1.bf16.msra.mxu0 %v1084
        %1116 = vmatprep.subr.bf16.mxu0 0
        %1117 = vmatpush2.bf16.msra.mxu0 0
        %1118 = vmatprep.subr.bf16.mxu0 0
        %1119 = vmatpush2.bf16.msra.mxu0 0
        %1120 = vmatprep.subr.bf16.mxu0 0
        %1121 = vmatpush2.bf16.msra.mxu0 0
        %1122 = vmatprep.subr.bf16.mxu0 0
        %1123 = vmatpush2.bf16.msra.mxu0 0
        %1124 = vmatprep.subr.bf16.mxu0 0
        %1125 = vmatpush2.bf16.msra.mxu0 0
        %1126 = vmatprep.subr.bf16.mxu0 0
        %1127 = vmatpush2.bf16.msra.mxu0 0
        %1128 = vmatprep.subr.bf16.mxu0 0
        %1129 = vmatpush2.bf16.msra.mxu0 0
        %1130 = vmatprep.subr.bf16.mxu0 0
        %1131 = vmatpush2.bf16.msra.mxu0 0
        %1132 = vmatprep.mubr.bf16.mxu0 0
        %1133 = vmatmul.mubr.bf16.gmra.mxu0 %v983
        %v1134 = vpop.f32.mrf.mxu0
        %v1135 = vadd.f32 0.0, %v1134
        %v1136 = vpop.f32.mrf.mxu0
        %v1137 = vpop.f32.mrf.mxu0
        %v1138 = vadd.f32 0.0, %v1137
        %v1139 = vpop.f32.mrf.mxu0
        %1140 = vmatprep.mubr.bf16.mxu0 0
        %1141 = vmatmul.mubr.bf16.gmra.mxu0 %v991
        %v1142 = vpop.f32.mrf.mxu0
        %v1143 = vadd.f32 0.0, %v1142
        %v1144 = vpop.f32.mrf.mxu0
        %v1145 = vpop.f32.mrf.mxu0
        %v1146 = vadd.f32 0.0, %v1145
        %v1147 = vpop.f32.mrf.mxu0
        %1148 = vmatprep.mubr.bf16.mxu0 0
        %1149 = vmatmul.mubr.bf16.gmra.mxu0 %v999
        %v1150 = vpop.f32.mrf.mxu0
        %v1151 = vadd.f32 0.0, %v1150
        %v1152 = vpop.f32.mrf.mxu0
        %v1153 = vpop.f32.mrf.mxu0
        %v1154 = vadd.f32 0.0, %v1153
        %v1155 = vpop.f32.mrf.mxu0
        %1156 = vmatprep.mubr.bf16.mxu0 0
        %1157 = vmatmul.mubr.bf16.gmra.mxu0 %v1007
        %v1158 = vpop.f32.mrf.mxu0
        %v1159 = vadd.f32 0.0, %v1158
        %v1160 = vpop.f32.mrf.mxu0
        %v1161 = vpop.f32.mrf.mxu0
        %v1162 = vadd.f32 0.0, %v1161
        %v1163 = vpop.f32.mrf.mxu0
        %1164 = vmatprep.mubr.bf16.mxu0 0
        %1165 = vmatmul.mubr.bf16.gmra.mxu0 %v1015
        %v1166 = vpop.f32.mrf.mxu0
        %v1167 = vadd.f32 0.0, %v1166
        %v1168 = vpop.f32.mrf.mxu0
        %v1169 = vpop.f32.mrf.mxu0
        %v1170 = vadd.f32 0.0, %v1169
        %v1171 = vpop.f32.mrf.mxu0
        %1172 = vmatprep.mubr.bf16.mxu0 0
        %1173 = vmatmul.mubr.bf16.gmra.mxu0 %v1023
        %v1174 = vpop.f32.mrf.mxu0
        %v1175 = vadd.f32 0.0, %v1174
        %v1176 = vpop.f32.mrf.mxu0
        %v1177 = vpop.f32.mrf.mxu0
        %v1178 = vadd.f32 0.0, %v1177
        %v1179 = vpop.f32.mrf.mxu0
        %1180 = vmatprep.mubr.bf16.mxu0 0
        %1181 = vmatmul.mubr.bf16.gmra.mxu0 %v1031
        %v1182 = vpop.f32.mrf.mxu0
        %v1183 = vadd.f32 0.0, %v1182
        %v1184 = vpop.f32.mrf.mxu0
        %v1185 = vpop.f32.mrf.mxu0
        %v1186 = vadd.f32 0.0, %v1185
        %v1187 = vpop.f32.mrf.mxu0
        %1188 = vmatprep.mubr.bf16.mxu0 0
        %1189 = vmatmul.mubr.bf16.gmra.mxu0 %v1039
        %v1190 = vpop.f32.mrf.mxu0
        %v1191 = vadd.f32 0.0, %v1190
        %v1192 = vpop.f32.mrf.mxu0
        %v1193 = vpop.f32.mrf.mxu0
        %v1194 = vadd.f32 0.0, %v1193
        %v1195 = vpop.f32.mrf.mxu0
        %1196 = vmatprep.mubr.bf16.mxu0 0
        %1197 = vmatmul.mubr.bf16.gmra.mxu0 %v1042
        %v1198 = vpop.f32.mrf.mxu0
        %v1199 = vadd.f32 0.0, %v1198
        %v1200 = vpop.f32.mrf.mxu0
        %v1201 = vpop.f32.mrf.mxu0
        %v1202 = vpop.f32.mrf.mxu0
        %1203 = vdwg.mxu0
        %v1220 = vunpack.c.l.b16 %v939
        %v1221 = vunpack.c.l.b16 %v940
        %v1222 = vunpack.c.l.b16 %v941
        %v1223 = vunpack.c.l.b16 %v942
        %v1224 = vunpack.c.l.b16 %v943
        %v1225 = vunpack.c.l.b16 %v944
        %v1226 = vunpack.c.l.b16 %v945
        %v1227 = vunpack.c.l.b16 %v946
        %v1228 = vunpack.c.l.b16 %v947
        %v1229 = vunpack.c.l.b16 %v948
        %v1230 = vunpack.c.l.b16 %v949
        %v1231 = vunpack.c.l.b16 %v950
        %v1232 = vunpack.c.l.b16 %v951
        %v1233 = vunpack.c.l.b16 %v952
        %v1234 = vunpack.c.l.b16 %v953
        %v1235 = vunpack.c.l.b16 %v954
        %v1236 = vpack.c.b16 %v1221, %v1220
        %v1237 = vpack.c.b16 %v1223, %v1222
        %v1238 = vpack.c.b16 %v1225, %v1224
        %v1239 = vpack.c.b16 %v1227, %v1226
        %v1240 = vpack.c.b16 %v1229, %v1228
        %v1241 = vpack.c.b16 %v1231, %v1230
        %v1242 = vpack.c.b16 %v1233, %v1232
        %v1243 = vpack.c.b16 %v1235, %v1234
        %1252 = vmatprep.subr.bf16.mxu0 0
        %1253 = vmatpush1.bf16.msra.mxu0 %v1243
        %1254 = vmatprep.subr.bf16.mxu0 0
        %1255 = vmatpush1.bf16.msra.mxu0 %v1242
        %1256 = vmatprep.subr.bf16.mxu0 0
        %1257 = vmatpush1.bf16.msra.mxu0 %v1241
        %1258 = vmatprep.subr.bf16.mxu0 0
        %1259 = vmatpush1.bf16.msra.mxu0 %v1240
        %1260 = vmatprep.subr.bf16.mxu0 0
        %1261 = vmatpush1.bf16.msra.mxu0 %v1239
        %1262 = vmatprep.subr.bf16.mxu0 0
        %1263 = vmatpush1.bf16.msra.mxu0 %v1238
        %1264 = vmatprep.subr.bf16.mxu0 0
        %1265 = vmatpush1.bf16.msra.mxu0 %v1237
        %1266 = vmatprep.subr.bf16.mxu0 0
        %1267 = vmatpush1.bf16.msra.mxu0 %v1236
        %1268 = vmatprep.subr.bf16.mxu0 0
        %1269 = vmatpush2.bf16.msra.mxu0 0
        %1270 = vmatprep.subr.bf16.mxu0 0
        %1271 = vmatpush2.bf16.msra.mxu0 0
        %1272 = vmatprep.subr.bf16.mxu0 0
        %1273 = vmatpush2.bf16.msra.mxu0 0
        %1274 = vmatprep.subr.bf16.mxu0 0
        %1275 = vmatpush2.bf16.msra.mxu0 0
        %1276 = vmatprep.subr.bf16.mxu0 0
        %1277 = vmatpush2.bf16.msra.mxu0 0
        %1278 = vmatprep.subr.bf16.mxu0 0
        %1279 = vmatpush2.bf16.msra.mxu0 0
        %1280 = vmatprep.subr.bf16.mxu0 0
        %1281 = vmatpush2.bf16.msra.mxu0 0
        %1282 = vmatprep.subr.bf16.mxu0 0
        %1283 = vmatpush2.bf16.msra.mxu0 0
        %1284 = vmatprep.mubr.bf16.mxu0 0
        %1285 = vmatmul.mubr.bf16.gmra.mxu0 %v929
        %v1286 = vpop.f32.mrf.mxu0
        %v1287 = vadd.f32 %v1135, %v1286
        %v1288 = vpop.f32.mrf.mxu0
        %v1289 = vpop.f32.mrf.mxu0
        %v1290 = vadd.f32 %v1138, %v1289
        %v1291 = vpop.f32.mrf.mxu0
        %1292 = vmatprep.mubr.bf16.mxu0 0
        %1293 = vmatmul.mubr.bf16.gmra.mxu0 %v930
        %v1294 = vpop.f32.mrf.mxu0
        %v1295 = vadd.f32 %v1143, %v1294
        %v1296 = vpop.f32.mrf.mxu0
        %v1297 = vpop.f32.mrf.mxu0
        %v1298 = vadd.f32 %v1146, %v1297
        %v1299 = vpop.f32.mrf.mxu0
        %1300 = vmatprep.mubr.bf16.mxu0 0
        %1301 = vmatmul.mubr.bf16.gmra.mxu0 %v931
        %v1302 = vpop.f32.mrf.mxu0
        %v1303 = vadd.f32 %v1151, %v1302
        %v1304 = vpop.f32.mrf.mxu0
        %v1305 = vpop.f32.mrf.mxu0
        %v1306 = vadd.f32 %v1154, %v1305
        %v1307 = vpop.f32.mrf.mxu0
        %1308 = vmatprep.mubr.bf16.mxu0 0
        %1309 = vmatmul.mubr.bf16.gmra.mxu0 %v932
        %v1310 = vpop.f32.mrf.mxu0
        %v1311 = vadd.f32 %v1159, %v1310
        %v1312 = vpop.f32.mrf.mxu0
        %v1313 = vpop.f32.mrf.mxu0
        %v1314 = vadd.f32 %v1162, %v1313
        %v1315 = vpop.f32.mrf.mxu0
        %1316 = vmatprep.mubr.bf16.mxu0 0
        %1317 = vmatmul.mubr.bf16.gmra.mxu0 %v933
        %v1318 = vpop.f32.mrf.mxu0
        %v1319 = vadd.f32 %v1167, %v1318
        %v1320 = vpop.f32.mrf.mxu0
        %v1321 = vpop.f32.mrf.mxu0
        %v1322 = vadd.f32 %v1170, %v1321
        %v1323 = vpop.f32.mrf.mxu0
        %1324 = vmatprep.mubr.bf16.mxu0 0
        %1325 = vmatmul.mubr.bf16.gmra.mxu0 %v934
        %v1326 = vpop.f32.mrf.mxu0
        %v1327 = vadd.f32 %v1175, %v1326
        %v1328 = vpop.f32.mrf.mxu0
        %v1329 = vpop.f32.mrf.mxu0
        %v1330 = vadd.f32 %v1178, %v1329
        %v1331 = vpop.f32.mrf.mxu0
        %1332 = vmatprep.mubr.bf16.mxu0 0
        %1333 = vmatmul.mubr.bf16.gmra.mxu0 %v935
        %v1334 = vpop.f32.mrf.mxu0
        %v1335 = vadd.f32 %v1183, %v1334
        %v1336 = vpop.f32.mrf.mxu0
        %v1337 = vpop.f32.mrf.mxu0
        %v1338 = vadd.f32 %v1186, %v1337
        %v1339 = vpop.f32.mrf.mxu0
        %1340 = vmatprep.mubr.bf16.mxu0 0
        %1341 = vmatmul.mubr.bf16.gmra.mxu0 %v936
        %v1342 = vpop.f32.mrf.mxu0
        %v1343 = vadd.f32 %v1191, %v1342
        %v1344 = vpop.f32.mrf.mxu0
        %v1345 = vpop.f32.mrf.mxu0
        %v1346 = vadd.f32 %v1194, %v1345
        %v1347 = vpop.f32.mrf.mxu0
        %1348 = vmatprep.mubr.bf16.mxu0 0
        %1349 = vmatmul.mubr.bf16.gmra.mxu0 %v937
        %v1350 = vpop.f32.mrf.mxu0
        %v1351 = vadd.f32 %v1199, %v1350
        %v1352 = vpop.f32.mrf.mxu0
        %v1353 = vpop.f32.mrf.mxu0
        %v1354 = vpop.f32.mrf.mxu0
        %1355 = vdwg.mxu0
        %s1356 = scalar_lea.vmem %s1, 320
        %v1357 = vld [vmem:[%s1356] sm:$0xf]
        %v1358 = vld [vmem:[%s1356 + $0x4] sm:$0xf]
        %v1359 = vld [vmem:[%s1356 + $0x8] sm:$0xf]
        %v1360 = vld [vmem:[%s1356 + $0xc] sm:$0xf]
        %v1361 = vld [vmem:[%s1356 + $0x10] sm:$0xf]
        %v1362 = vld [vmem:[%s1356 + $0x14] sm:$0xf]
        %v1363 = vld [vmem:[%s1356 + $0x18] sm:$0xf]
        %v1364 = vld [vmem:[%s1356 + $0x1c] sm:$0xf]
        %v1365 = vld [vmem:[%s1356 + $0x20] sm:$0xf]
        %v1366 = vld [vmem:[%s1356 + $0x24] sm:$0xf]
        %v1367 = vld [vmem:[%s1356 + $0x28] sm:$0xf]
        %v1368 = vld [vmem:[%s1356 + $0x2c] sm:$0xf]
        %v1369 = vld [vmem:[%s1356 + $0x30] sm:$0xf]
        %v1370 = vld [vmem:[%s1356 + $0x34] sm:$0xf]
        %v1371 = vld [vmem:[%s1356 + $0x38] sm:$0xf]
        %v1372 = vld [vmem:[%s1356 + $0x3c] sm:$0xf]
        %v1382 = vrot.slane %v929, 1
        %v1383 = vrot.slane %v930, 1
        %v1384 = vsel %vm694, %v1382, %v1383
        %v1385 = vrot.slane %v931, 1
        %v1386 = vsel %vm694, %v1383, %v1385
        %v1387 = vrot.slane %v932, 1
        %v1388 = vsel %vm694, %v1385, %v1387
        %v1389 = vrot.slane %v933, 1
        %v1390 = vsel %vm694, %v1387, %v1389
        %v1391 = vrot.slane %v934, 1
        %v1392 = vsel %vm694, %v1389, %v1391
        %v1393 = vrot.slane %v935, 1
        %v1394 = vsel %vm694, %v1391, %v1393
        %v1395 = vrot.slane %v936, 1
        %v1396 = vsel %vm694, %v1393, %v1395
        %v1397 = vrot.slane %v937, 1
        %v1398 = vsel %vm694, %v1395, %v1397
        %v1424 = vunpack.c.l.b16 %v1357
        %v1425 = vunpack.c.l.b16 %v1358
        %v1426 = vunpack.c.l.b16 %v1359
        %v1427 = vunpack.c.l.b16 %v1360
        %v1428 = vunpack.c.l.b16 %v1361
        %v1429 = vunpack.c.l.b16 %v1362
        %v1430 = vunpack.c.l.b16 %v1363
        %v1431 = vunpack.c.l.b16 %v1364
        %v1432 = vunpack.c.l.b16 %v1365
        %v1433 = vunpack.c.l.b16 %v1366
        %v1434 = vunpack.c.l.b16 %v1367
        %v1435 = vunpack.c.l.b16 %v1368
        %v1436 = vunpack.c.l.b16 %v1369
        %v1437 = vunpack.c.l.b16 %v1370
        %v1438 = vunpack.c.l.b16 %v1371
        %v1439 = vunpack.c.l.b16 %v1372
        %v1440 = vpack.c.b16 %v1425, %v1424
        %v1441 = vpack.c.b16 %v1427, %v1426
        %v1442 = vpack.c.b16 %v1429, %v1428
        %v1443 = vpack.c.b16 %v1431, %v1430
        %v1444 = vpack.c.b16 %v1433, %v1432
        %v1445 = vpack.c.b16 %v1435, %v1434
        %v1446 = vpack.c.b16 %v1437, %v1436
        %v1447 = vpack.c.b16 %v1439, %v1438
        %1456 = vmatprep.subr.bf16.mxu0 0
        %1457 = vmatpush1.bf16.msra.mxu0 %v1447
        %1458 = vmatprep.subr.bf16.mxu0 0
        %1459 = vmatpush1.bf16.msra.mxu0 %v1446
        %1460 = vmatprep.subr.bf16.mxu0 0
        %1461 = vmatpush1.bf16.msra.mxu0 %v1445
        %1462 = vmatprep.subr.bf16.mxu0 0
        %1463 = vmatpush1.bf16.msra.mxu0 %v1444
        %1464 = vmatprep.subr.bf16.mxu0 0
        %1465 = vmatpush1.bf16.msra.mxu0 %v1443
        %1466 = vmatprep.subr.bf16.mxu0 0
        %1467 = vmatpush1.bf16.msra.mxu0 %v1442
        %1468 = vmatprep.subr.bf16.mxu0 0
        %1469 = vmatpush1.bf16.msra.mxu0 %v1441
        %1470 = vmatprep.subr.bf16.mxu0 0
        %1471 = vmatpush1.bf16.msra.mxu0 %v1440
        %1472 = vmatprep.subr.bf16.mxu0 0
        %1473 = vmatpush2.bf16.msra.mxu0 0
        %1474 = vmatprep.subr.bf16.mxu0 0
        %1475 = vmatpush2.bf16.msra.mxu0 0
        %1476 = vmatprep.subr.bf16.mxu0 0
        %1477 = vmatpush2.bf16.msra.mxu0 0
        %1478 = vmatprep.subr.bf16.mxu0 0
        %1479 = vmatpush2.bf16.msra.mxu0 0
        %1480 = vmatprep.subr.bf16.mxu0 0
        %1481 = vmatpush2.bf16.msra.mxu0 0
        %1482 = vmatprep.subr.bf16.mxu0 0
        %1483 = vmatpush2.bf16.msra.mxu0 0
        %1484 = vmatprep.subr.bf16.mxu0 0
        %1485 = vmatpush2.bf16.msra.mxu0 0
        %1486 = vmatprep.subr.bf16.mxu0 0
        %1487 = vmatpush2.bf16.msra.mxu0 0
        %1488 = vmatprep.mubr.bf16.mxu0 0
        %1489 = vmatmul.mubr.bf16.gmra.mxu0 %v1384
        %v1490 = vpop.f32.mrf.mxu0
        %v1491 = vadd.f32 0.0, %v1490
        %v1492 = vpop.f32.mrf.mxu0
        %v1493 = vpop.f32.mrf.mxu0
        %v1494 = vadd.f32 0.0, %v1493
        %v1495 = vpop.f32.mrf.mxu0
        %1496 = vmatprep.mubr.bf16.mxu0 0
        %1497 = vmatmul.mubr.bf16.gmra.mxu0 %v1386
        %v1498 = vpop.f32.mrf.mxu0
        %v1499 = vadd.f32 0.0, %v1498
        %v1500 = vpop.f32.mrf.mxu0
        %v1501 = vpop.f32.mrf.mxu0
        %v1502 = vadd.f32 0.0, %v1501
        %v1503 = vpop.f32.mrf.mxu0
        %1504 = vmatprep.mubr.bf16.mxu0 0
        %1505 = vmatmul.mubr.bf16.gmra.mxu0 %v1388
        %v1506 = vpop.f32.mrf.mxu0
        %v1507 = vadd.f32 0.0, %v1506
        %v1508 = vpop.f32.mrf.mxu0
        %v1509 = vpop.f32.mrf.mxu0
        %v1510 = vadd.f32 0.0, %v1509
        %v1511 = vpop.f32.mrf.mxu0
        %1512 = vmatprep.mubr.bf16.mxu0 0
        %1513 = vmatmul.mubr.bf16.gmra.mxu0 %v1390
        %v1514 = vpop.f32.mrf.mxu0
        %v1515 = vadd.f32 0.0, %v1514
        %v1516 = vpop.f32.mrf.mxu0
        %v1517 = vpop.f32.mrf.mxu0
        %v1518 = vadd.f32 0.0, %v1517
        %v1519 = vpop.f32.mrf.mxu0
        %1520 = vmatprep.mubr.bf16.mxu0 0
        %1521 = vmatmul.mubr.bf16.gmra.mxu0 %v1392
        %v1522 = vpop.f32.mrf.mxu0
        %v1523 = vadd.f32 0.0, %v1522
        %v1524 = vpop.f32.mrf.mxu0
        %v1525 = vpop.f32.mrf.mxu0
        %v1526 = vadd.f32 0.0, %v1525
        %v1527 = vpop.f32.mrf.mxu0
        %1528 = vmatprep.mubr.bf16.mxu0 0
        %1529 = vmatmul.mubr.bf16.gmra.mxu0 %v1394
        %v1530 = vpop.f32.mrf.mxu0
        %v1531 = vadd.f32 0.0, %v1530
        %v1532 = vpop.f32.mrf.mxu0
        %v1533 = vpop.f32.mrf.mxu0
        %v1534 = vadd.f32 0.0, %v1533
        %v1535 = vpop.f32.mrf.mxu0
        %1536 = vmatprep.mubr.bf16.mxu0 0
        %1537 = vmatmul.mubr.bf16.gmra.mxu0 %v1396
        %v1538 = vpop.f32.mrf.mxu0
        %v1539 = vadd.f32 0.0, %v1538
        %v1540 = vpop.f32.mrf.mxu0
        %v1541 = vpop.f32.mrf.mxu0
        %v1542 = vadd.f32 0.0, %v1541
        %v1543 = vpop.f32.mrf.mxu0
        %1544 = vmatprep.mubr.bf16.mxu0 0
        %1545 = vmatmul.mubr.bf16.gmra.mxu0 %v1398
        %v1546 = vpop.f32.mrf.mxu0
        %v1547 = vadd.f32 0.0, %v1546
        %v1548 = vpop.f32.mrf.mxu0
        %v1549 = vpop.f32.mrf.mxu0
        %v1550 = vadd.f32 0.0, %v1549
        %v1551 = vpop.f32.mrf.mxu0
        %1552 = vmatprep.mubr.bf16.mxu0 0
        %1553 = vmatmul.mubr.bf16.gmra.mxu0 %v1397
        %v1554 = vpop.f32.mrf.mxu0
        %v1555 = vadd.f32 0.0, %v1554
        %v1556 = vpop.f32.mrf.mxu0
        %v1557 = vpop.f32.mrf.mxu0
        %v1558 = vpop.f32.mrf.mxu0
        %1559 = vdwg.mxu0
        %v1560 = vadd.f32 %v1287, %v1491
        %v1561 = vadd.f32 %v1290, %v1494
        %v1562 = vadd.f32 %v1295, %v1499
        %v1563 = vadd.f32 %v1298, %v1502
        %v1564 = vadd.f32 %v1303, %v1507
        %v1565 = vadd.f32 %v1306, %v1510
        %v1566 = vadd.f32 %v1311, %v1515
        %v1567 = vadd.f32 %v1314, %v1518
        %v1568 = vadd.f32 %v1319, %v1523
        %v1569 = vadd.f32 %v1322, %v1526
        %v1570 = vadd.f32 %v1327, %v1531
        %v1571 = vadd.f32 %v1330, %v1534
        %v1572 = vadd.f32 %v1335, %v1539
        %v1573 = vadd.f32 %v1338, %v1542
        %v1574 = vadd.f32 %v1343, %v1547
        %v1575 = vadd.f32 %v1346, %v1550
        %v1576 = vadd.f32 %v1351, %v1555
        %v1577 = vld [vmem:[%s2 + $0x1] sm:$0x1]
        %v1578 = vlaneseq
        %v1579 = vshrl.u32 %v1578, 7
        %v1580 = vsub.s32 0, %v1579
        %v1581 = vrot.slane %v1577, %v1580
        %v1582 = vadd.f32 %v1560, %v1581
        %v1583 = vadd.f32 %v1561, %v1581
        %v1584 = vadd.f32 %v1562, %v1581
        %v1585 = vadd.f32 %v1563, %v1581
        %v1586 = vadd.f32 %v1564, %v1581
        %v1587 = vadd.f32 %v1565, %v1581
        %v1588 = vadd.f32 %v1566, %v1581
        %v1589 = vadd.f32 %v1567, %v1581
        %v1590 = vadd.f32 %v1568, %v1581
        %v1591 = vadd.f32 %v1569, %v1581
        %v1592 = vadd.f32 %v1570, %v1581
        %v1593 = vadd.f32 %v1571, %v1581
        %v1594 = vadd.f32 %v1572, %v1581
        %v1595 = vadd.f32 %v1573, %v1581
        %v1596 = vadd.f32 %v1574, %v1581
        %v1597 = vadd.f32 %v1575, %v1581
        %v1598 = vadd.f32 %v1576, %v1581
        %v1599 = vmax.f32 %v1582, 0.0
        %v1600 = vmax.f32 %v1583, 0.0
        %v1601 = vmax.f32 %v1584, 0.0
        %v1602 = vmax.f32 %v1585, 0.0
        %v1603 = vmax.f32 %v1586, 0.0
        %v1604 = vmax.f32 %v1587, 0.0
        %v1605 = vmax.f32 %v1588, 0.0
        %v1606 = vmax.f32 %v1589, 0.0
        %v1607 = vmax.f32 %v1590, 0.0
        %v1608 = vmax.f32 %v1591, 0.0
        %v1609 = vmax.f32 %v1592, 0.0
        %v1610 = vmax.f32 %v1593, 0.0
        %v1611 = vmax.f32 %v1594, 0.0
        %v1612 = vmax.f32 %v1595, 0.0
        %v1613 = vmax.f32 %v1596, 0.0
        %v1614 = vmax.f32 %v1597, 0.0
        %v1615 = vmax.f32 %v1598, 0.0
        %v1616 = vld [vmem:[%s4] sm:$0xff]
        %v1617 = vpack.c.bf16 %v1600, %v1599
        %v1618 = vpack.c.bf16 %v1602, %v1601
        %v1619 = vpack.c.bf16 %v1604, %v1603
        %v1620 = vpack.c.bf16 %v1606, %v1605
        %v1621 = vpack.c.bf16 %v1608, %v1607
        %v1622 = vpack.c.bf16 %v1610, %v1609
        %v1623 = vpack.c.bf16 %v1612, %v1611
        %v1624 = vpack.c.bf16 %v1614, %v1613
        %v1625 = vpack.c.bf16 %v1615, %v1615
        %v1627 = vunpack.c.l.b16 %v1616
        %v1628 = vunpack.c.h.b16 %v1616
        %v1629 = vpack.c.b16 %v1627, %v1627
        %v1630 = vpack.c.b16 %v1628, %v1628
        %vm1632 = vcmask 31744
        %v1634 = vsel %vm1632, %v1630, 0
        %vm1636 = vcmask 1041408
        %v1638 = vsel %vm1636, %v1625, 0
        %1640 = vmatprep.subr.bf16.mxu0 0
        %1641 = vmatpush1.bf16.msra.mxu0 %v1624
        %1642 = vmatprep.subr.bf16.mxu0 0
        %1643 = vmatpush1.bf16.msra.mxu0 %v1623
        %1644 = vmatprep.subr.bf16.mxu0 0
        %1645 = vmatpush1.bf16.msra.mxu0 %v1622
        %1646 = vmatprep.subr.bf16.mxu0 0
        %1647 = vmatpush1.bf16.msra.mxu0 %v1621
        %1648 = vmatprep.subr.bf16.mxu0 0
        %1649 = vmatpush1.bf16.msra.mxu0 %v1620
        %1650 = vmatprep.subr.bf16.mxu0 0
        %1651 = vmatpush1.bf16.msra.mxu0 %v1619
        %1652 = vmatprep.subr.bf16.mxu0 0
        %1653 = vmatpush1.bf16.msra.mxu0 %v1618
        %1654 = vmatprep.subr.bf16.mxu0 0
        %1655 = vmatpush1.bf16.msra.mxu0 %v1617
        %1656 = vmatprep.subr.bf16.mxu0 0
        %1657 = vmatpush2.bf16.msra.mxu0 0
        %1658 = vmatprep.subr.bf16.mxu0 0
        %1659 = vmatpush2.bf16.msra.mxu0 0
        %1660 = vmatprep.subr.bf16.mxu0 0
        %1661 = vmatpush2.bf16.msra.mxu0 0
        %1662 = vmatprep.subr.bf16.mxu0 0
        %1663 = vmatpush2.bf16.msra.mxu0 0
        %1664 = vmatprep.subr.bf16.mxu0 0
        %1665 = vmatpush2.bf16.msra.mxu0 0
        %1666 = vmatprep.subr.bf16.mxu0 0
        %1667 = vmatpush2.bf16.msra.mxu0 0
        %1668 = vmatprep.subr.bf16.mxu0 0
        %1669 = vmatpush2.bf16.msra.mxu0 0
        %1670 = vmatprep.subr.bf16.mxu0 0
        %1671 = vmatpush2.bf16.msra.mxu0 %v1638
        %1672 = vmatprep.mubr.bf16.mxu0 %v1634
        %1673 = vmatmul.mubr.bf16.gmra.mxu0 %v1629
        %v1674 = vpop.f32.mrf.mxu0
        %v1675 = vadd.f32 0.0, %v1674
        %v1676 = vpop.f32.mrf.mxu0
        %v1677 = vpop.f32.mrf.mxu0
        %v1678 = vpop.f32.mrf.mxu0
        %1679 = vdwg.mxu0
        %v1680 = vpack.c.bf16 %v1675, %v1675
        %v1681 = vld [vmem:[%s3] sm:$0xf]
        %v1682 = vld [vmem:[%s3 + $0x4] sm:$0xf]
        %v1683 = vld [vmem:[%s3 + $0x8] sm:$0xf]
        %v1684 = vld [vmem:[%s3 + $0xc] sm:$0xf]
        %v1685 = vld [vmem:[%s3 + $0x10] sm:$0xf]
        %v1686 = vld [vmem:[%s3 + $0x14] sm:$0xf]
        %v1687 = vld [vmem:[%s3 + $0x18] sm:$0xf]
        %v1688 = vld [vmem:[%s3 + $0x1c] sm:$0xf]
        %v1689 = vld [vmem:[%s3 + $0x20] sm:$0xf]
        %v1690 = vld [vmem:[%s3 + $0x24] sm:$0xf]
        %v1691 = vld [vmem:[%s3 + $0x28] sm:$0xf]
        %v1692 = vld [vmem:[%s3 + $0x2c] sm:$0xf]
        %v1693 = vld [vmem:[%s3 + $0x30] sm:$0xf]
        %v1694 = vld [vmem:[%s3 + $0x34] sm:$0xf]
        %v1695 = vld [vmem:[%s3 + $0x38] sm:$0xf]
        %v1696 = vld [vmem:[%s3 + $0x3c] sm:$0xf]
        %v1697 = vld [vmem:[%s2 + $0x2] sm:$0x1]
        %v1698 = vlaneseq
        %v1699 = vshrl.u32 %v1698, 7
        %v1700 = vsub.s32 0, %v1699
        %v1701 = vrot.slane %v1697, %v1700
        %v1718 = vunpack.c.l.b16 %v1681
        %v1719 = vunpack.c.l.b16 %v1682
        %v1720 = vunpack.c.l.b16 %v1683
        %v1721 = vunpack.c.l.b16 %v1684
        %v1722 = vunpack.c.l.b16 %v1685
        %v1723 = vunpack.c.l.b16 %v1686
        %v1724 = vunpack.c.l.b16 %v1687
        %v1725 = vunpack.c.l.b16 %v1688
        %v1726 = vunpack.c.l.b16 %v1689
        %v1727 = vunpack.c.l.b16 %v1690
        %v1728 = vunpack.c.l.b16 %v1691
        %v1729 = vunpack.c.l.b16 %v1692
        %v1730 = vunpack.c.l.b16 %v1693
        %v1731 = vunpack.c.l.b16 %v1694
        %v1732 = vunpack.c.l.b16 %v1695
        %v1733 = vunpack.c.l.b16 %v1696
        %v1734 = vpack.c.b16 %v1719, %v1718
        %v1735 = vpack.c.b16 %v1721, %v1720
        %v1736 = vpack.c.b16 %v1723, %v1722
        %v1737 = vpack.c.b16 %v1725, %v1724
        %v1738 = vpack.c.b16 %v1727, %v1726
        %v1739 = vpack.c.b16 %v1729, %v1728
        %v1740 = vpack.c.b16 %v1731, %v1730
        %v1741 = vpack.c.b16 %v1733, %v1732
        %1750 = vmatprep.subr.bf16.mxu0 0
        %1751 = vmatpush1.bf16.msra.mxu0 %v1741
        %1752 = vmatprep.subr.bf16.mxu0 0
        %1753 = vmatpush1.bf16.msra.mxu0 %v1740
        %1754 = vmatprep.subr.bf16.mxu0 0
        %1755 = vmatpush1.bf16.msra.mxu0 %v1739
        %1756 = vmatprep.subr.bf16.mxu0 0
        %1757 = vmatpush1.bf16.msra.mxu0 %v1738
        %1758 = vmatprep.subr.bf16.mxu0 0
        %1759 = vmatpush1.bf16.msra.mxu0 %v1737
        %1760 = vmatprep.subr.bf16.mxu0 0
        %1761 = vmatpush1.bf16.msra.mxu0 %v1736
        %1762 = vmatprep.subr.bf16.mxu0 0
        %1763 = vmatpush1.bf16.msra.mxu0 %v1735
        %1764 = vmatprep.subr.bf16.mxu0 0
        %1765 = vmatpush1.bf16.msra.mxu0 %v1734
        %1766 = vmatprep.subr.bf16.mxu0 0
        %1767 = vmatpush2.bf16.msra.mxu0 0
        %1768 = vmatprep.subr.bf16.mxu0 0
        %1769 = vmatpush2.bf16.msra.mxu0 0
        %1770 = vmatprep.subr.bf16.mxu0 0
        %1771 = vmatpush2.bf16.msra.mxu0 0
        %1772 = vmatprep.subr.bf16.mxu0 0
        %1773 = vmatpush2.bf16.msra.mxu0 0
        %1774 = vmatprep.subr.bf16.mxu0 0
        %1775 = vmatpush2.bf16.msra.mxu0 0
        %1776 = vmatprep.subr.bf16.mxu0 0
        %1777 = vmatpush2.bf16.msra.mxu0 0
        %1778 = vmatprep.subr.bf16.mxu0 0
        %1779 = vmatpush2.bf16.msra.mxu0 0
        %1780 = vmatprep.subr.bf16.mxu0 0
        %1781 = vmatpush2.bf16.msra.mxu0 0
        %1782 = vmatprep.mubr.bf16.mxu0 0
        %1783 = vmatmul.mubr.bf16.gmra.mxu0 %v1680
        %v1784 = vpop.f32.mrf.mxu0
        %v1785 = vadd.f32 %v1701, %v1784
        %v1786 = vpop.f32.mrf.mxu0
        %v1787 = vpop.f32.mrf.mxu0
        %v1788 = vpop.f32.mrf.mxu0
        %1789 = vdwg.mxu0
        %vm1790 = vcmask 80896
        %1791 = vst.msk [vmem:[%s217] sm:$0xff] %vm1790, %v1785
        %s1792 = sand.u32 %s137, 1
        %s1793 = scalar_lea.sflag [#allocation3], %s1792
        %s1794 = sand.u32 %s137, 1
        %s1795 = smul.addr %s1794, 8
        %s1796 = scalar_lea.vmem [#allocation2], %s1795
        // Predicated region
        $region41: #{cnn_forward.1} parent=39 // pred_check
          %p1797 = pneg %p147
        $region42: #{cnn_forward.1} parent=39 // pred_check_branch
          %1799 = sbr.rel (%p1797) target = $region44
        $region43: #{cnn_forward.1} parent=39 // pred_region
          %s1801 = ssub.s32 128, 128
          %1802 = vsyncadd %s1793, %s1801
          %s1803 = smul.addr %s19, 128
          %s1804 = scalar_lea.hbm %s5, %s1803
          %s1806 = sshll.u32 %s1796, 4
          %s1807 = int_to_ptr.vmem [resolvable:$true] %s1806
          %1809 = dma.vmem_to_hbm [thread:$0]  %s1807, 128, %s1804, %s1793
        $region44: #{cnn_forward.1} parent=39 // pred_fallthru
          _
      $region40: #{cnn_forward.1} parent=5 // pred_fallthru
        _
      %p1810 = scmp.le.s32.totalorder 2, %s14
      // Predicated region
      $region45: #{cnn_forward.1} parent=5 // pred_check
        %p1811 = pneg %p1810
      $region46: #{cnn_forward.1} parent=5 // pred_check_branch
        %1813 = sbr.rel (%p1811) target = $region48
      $region47: #{cnn_forward.1} parent=5 // pred_region
        %s1814 = ssub.s32 %s14, 2
        // Predicated region
        $region49: #{cnn_forward.1} parent=47 // pred_check
          %p1815 = pneg %p153
        $region50: #{cnn_forward.1} parent=47 // pred_check_branch
          %1817 = sbr.rel (%p1815) target = $region52
        $region51: #{cnn_forward.1} parent=47 // pred_region
          %s1818 = sand.u32 %s138, 1
          %s1819 = scalar_lea.sflag [#allocation3], %s1818
          %s1820 = sand.u32 %s138, 1
          %s1821 = smul.addr %s1820, 8
          %s1822 = scalar_lea.vmem [#allocation2], %s1821
          %1823 = dma.done %s1819, 128
        $region52: #{cnn_forward.1} parent=47 // pred_fallthru
          _
      $region48: #{cnn_forward.1} parent=5 // pred_fallthru
        _
    $region6: #{cnn_forward.1} parent=1 // loop_footer
      %s18 = sadd.s32 1, %s14
    $region7: #{cnn_forward.1} parent=1 // loop_footer_branch
      %13 = sbr.rel target = $region3
    $region8: #{cnn_forward.1} parent=1 // loop_exit
      _
    %1824 = vsyncpa [#allocation3], 1
    %s1825 = scalar_lea.sflag [#allocation3], 1
    %1826 = vsyncpa %s1825, 1

</llo_original>
